<compile_context>
chip_gen: v7x
topology: tpu7x:2x2x1
jax: 0.10.0
libtpu: 0.0.40
codegen_flags: <defaults>
</compile_context>

<pallas_src>
import functools

import jax
import jax.numpy as jnp
from jax.experimental import pallas as pl
from jax.experimental.pallas import tpu as pltpu


def make_lstm_kernel(T, Bp, H, O):
    """Kernel factory with static (T, Bp, H, O) so the time loop fully unrolls."""

    def lstm_kernel(x_ref, w_ref, s_ref, out_ref):
        # x_ref:   (T*Bp, 1)  f32   time-major rows (row t*Bp + b == x[b, t, 0])
        # w_ref:   (3H, 4H)   bf16  rows [W_hh_l0 ; W_ih_l1 ; W_hh_l1],
        #                           gate columns packed [i | f | o | g]
        # s_ref:   (8, 4H)    f32   rows: 0=W_ih_l0 row, 1=b0, 2=b1,
        #                           3..3+O-1 = fc weight rows (first H cols),
        #                           3+O = fc bias (first O cols), rest zero
        # out_ref: (Bp, O)    f32
        scal = s_ref[...]
        wih0_row = scal[0:1, :]                                   # (1, 4H)
        b0 = scal[1:2, :]                                         # (1, 4H)
        b1 = jnp.broadcast_to(scal[2:3, :], (Bp, 4 * H))          # hoisted bcast

        w = w_ref[...]
        whh0 = w[0 * H:1 * H, :]                                  # (H, 4H) bf16
        wih1 = w[1 * H:2 * H, :]                                  # (H, 4H) bf16
        whh1 = w[2 * H:3 * H, :]                                  # (H, 4H) bf16

        # Layer-0 input projection for all T steps at once.  I == 1, so this is
        # an exact f32 VPU broadcast multiply (no MXU, no bf16 cast of inputs).
        xp = x_ref[...] * wih0_row + b0                           # (T*Bp, 4H) f32

        def gate_update(gates, c):
            # Gate columns are [i, f, o, g]: one sigmoid + one tanh EUP launch.
            s_act = jax.nn.sigmoid(gates[:, :3 * H])              # [i | f | o]
            g = jnp.tanh(gates[:, 3 * H:])
            c_new = s_act[:, H:2 * H] * c + s_act[:, :H] * g
            h_new = s_act[:, 2 * H:3 * H] * jnp.tanh(c_new)
            return h_new, c_new

        zeros = jnp.zeros((Bp, H), jnp.float32)
        h1, c1, h2, c2 = zeros, zeros, zeros, zeros

        # Fully unrolled serial recurrence (T static and small).
        for t in range(T):
            # layer 0: input projection precomputed; one (Bp,H)@(H,4H) bf16 dot
            g0 = xp[t * Bp:(t + 1) * Bp, :] + jnp.dot(
                h1.astype(jnp.bfloat16), whh0, preferred_element_type=jnp.float32)
            h1, c1 = gate_update(g0, c1)
            # inter-layer dropout(p=0.3) is identity at inference.
            # layer 1: two K=64 bf16 dots (no per-step lane concat of [h1, h2]).
            g1 = (jnp.dot(h1.astype(jnp.bfloat16), wih1,
                          preferred_element_type=jnp.float32)
                  + jnp.dot(h2.astype(jnp.bfloat16), whh1,
                            preferred_element_type=jnp.float32)
                  + b1)
            h2, c2 = gate_update(g1, c2)

        # fc on last top-layer hidden state: O is tiny, so do each output
        # column as a VPU multiply + lane reduction (no N=1 f32 MXU matmul).
        cols = [jnp.sum(h2 * scal[3 + j:4 + j, :H], axis=-1, keepdims=True)
                for j in range(O)]
        out = cols[0] if O == 1 else jnp.concatenate(cols, axis=1)
        out_ref[...] = out + scal[3 + O:4 + O, :O]

    return lstm_kernel


@functools.partial(jax.jit, static_argnames=("H", "O"))
def weather_lstm_forward(x, w_slab, s_slab, *, H, O):
    """x: (B, T, 1) f32, packed slabs -> (B, output_days, 1) f32."""
    B, T, I = x.shape
    Bp = ((B + 7) // 8) * 8  # pad batch to the f32 sublane tile (8)

    # Wrapper-side layout plumbing only: zero-pad batch, time-major flatten.
    x_pad = jnp.zeros((Bp, T, I), x.dtype).at[:B].set(x)
    x_flat = jnp.transpose(x_pad, (1, 0, 2)).reshape(T * Bp, I)

    out = pl.pallas_call(
        make_lstm_kernel(T, Bp, H, O),
        out_shape=jax.ShapeDtypeStruct((Bp, O), jnp.float32),
        in_specs=[pl.BlockSpec(memory_space=pltpu.MemorySpace.VMEM)] * 3,
        out_specs=pl.BlockSpec(memory_space=pltpu.MemorySpace.VMEM),
    )(x_flat, w_slab, s_slab)
    return out[:B, :, None]  # drop batch padding, unsqueeze(-1) -> (B, O, 1)


def init_torch_params(key, input_size=1, hidden_size=64, output_days=1):
    """PyTorch-shaped parameters with U(-1/sqrt(H), 1/sqrt(H)) init."""
    H, I, O = hidden_size, input_size, output_days
    k = 1.0 / jnp.sqrt(jnp.float32(H))
    keys = jax.random.split(key, 10)

    def u(kk, shape):
        return jax.random.uniform(kk, shape, jnp.float32, minval=-k, maxval=k)

    return {
        "weight_ih_l0": u(keys[0], (4 * H, I)),
        "weight_hh_l0": u(keys[1], (4 * H, H)),
        "bias_ih_l0": u(keys[2], (4 * H,)),
        "bias_hh_l0": u(keys[3], (4 * H,)),
        "weight_ih_l1": u(keys[4], (4 * H, H)),
        "weight_hh_l1": u(keys[5], (4 * H, H)),
        "bias_ih_l1": u(keys[6], (4 * H,)),
        "bias_hh_l1": u(keys[7], (4 * H,)),
        "fc_weight": u(keys[8], (O, H)),
        "fc_bias": u(keys[9], (O,)),
    }


def pack_params(p, hidden_size=64, output_days=1):
    """Wrapper-side packing: transpose to (in, 4H), permute gate columns
    [i,f,g,o] -> [i,f,o,g], pre-sum biases, and fuse everything into one bf16
    weight slab + one f32 scalar slab (2 parameter DMAs total)."""
    H, O = hidden_size, output_days
    assert p["weight_ih_l0"].shape[1] == 1  # TODO(synk): s_slab row-0 packing assumes input_size == 1
    perm = jnp.concatenate([jnp.arange(0, 2 * H),
                            jnp.arange(3 * H, 4 * H),
                            jnp.arange(2 * H, 3 * H)])

    def gates_t(w):  # (4H, in) -> (in, 4H) with permuted gate columns
        return w.T[:, perm]

    wih0 = gates_t(p["weight_ih_l0"])                       # (1, 4H)
    whh0 = gates_t(p["weight_hh_l0"])                       # (H, 4H)
    wih1 = gates_t(p["weight_ih_l1"])                       # (H, 4H)
    whh1 = gates_t(p["weight_hh_l1"])                       # (H, 4H)
    b0 = (p["bias_ih_l0"] + p["bias_hh_l0"])[perm]
    b1 = (p["bias_ih_l1"] + p["bias_hh_l1"])[perm]

    w_slab = jnp.concatenate([whh0, wih1, whh1], axis=0).astype(jnp.bfloat16)

    n_rows = 3 + O + 1
    rows_pad = ((n_rows + 7) // 8) * 8
    s_slab = jnp.zeros((rows_pad, 4 * H), jnp.float32)
    s_slab = s_slab.at[0, :].set(wih0[0])
    s_slab = s_slab.at[1, :].set(b0)
    s_slab = s_slab.at[2, :].set(b1)
    s_slab = s_slab.at[3:3 + O, :H].set(p["fc_weight"])
    s_slab = s_slab.at[3 + O, :O].set(p["fc_bias"])
    return w_slab, s_slab


def reference_forward(x, p, matmul_dtype=jnp.float32):
    """Pure-JAX reference on PyTorch-shaped params.  matmul_dtype=bf16 mirrors
    the kernel's bf16-operand / f32-accumulate recurrent dots; f32 gives the
    true module semantics (inference mode, dropout = identity)."""
    B, T, I = x.shape
    H = p["weight_hh_l0"].shape[1]
    md = matmul_dtype
    b0 = p["bias_ih_l0"] + p["bias_hh_l0"]
    b1 = p["bias_ih_l1"] + p["bias_hh_l1"]

    def gate_update(g, c):
        i = jax.nn.sigmoid(g[:, 0 * H:1 * H])
        f = jax.nn.sigmoid(g[:, 1 * H:2 * H])
        gg = jnp.tanh(g[:, 2 * H:3 * H])
        o = jax.nn.sigmoid(g[:, 3 * H:4 * H])
        c_new = f * c + i * gg
        return o * jnp.tanh(c_new), c_new

    h1 = c1 = h2 = c2 = jnp.zeros((B, H), jnp.float32)
    for t in range(T):
        g0 = (jnp.dot(x[:, t, :], p["weight_ih_l0"].T,          # I==1: exact
                      preferred_element_type=jnp.float32)
              + jnp.dot(h1.astype(md), p["weight_hh_l0"].T.astype(md),
                        preferred_element_type=jnp.float32) + b0)
        h1, c1 = gate_update(g0, c1)
        g1 = (jnp.dot(h1.astype(md), p["weight_ih_l1"].T.astype(md),
                      preferred_element_type=jnp.float32)
              + jnp.dot(h2.astype(md), p["weight_hh_l1"].T.astype(md),
                        preferred_element_type=jnp.float32) + b1)
        h2, c2 = gate_update(g1, c2)
    out = (jnp.dot(h2, p["fc_weight"].T, preferred_element_type=jnp.float32)
           + p["fc_bias"])
    return out[..., None]


if __name__ == "__main__":
    key = jax.random.PRNGKey(0)
    pkey, xkey = jax.random.split(key)

    B, T, I, H, O = 2, 8, 1, 64, 1
    tparams = init_torch_params(pkey, input_size=I, hidden_size=H, output_days=O)
    w_slab, s_slab = pack_params(tparams, hidden_size=H, output_days=O)
    x = jax.random.normal(xkey, (B, T, I), jnp.float32)

    out = jax.block_until_ready(weather_lstm_forward(x, w_slab, s_slab, H=H, O=O))
    assert out.shape == (B, O, 1), out.shape

    # Check 1: against a reference mirroring the kernel math (bf16 recurrent
    # matmul operands, f32 accumulation / gate math / input projection).
    ref_bf16 = jax.block_until_ready(reference_forward(x, tparams, jnp.bfloat16))
    assert jnp.allclose(out, ref_bf16, rtol=2e-3, atol=2e-3), (out, ref_bf16)

    # Check 2: fidelity to pure-fp32 module semantics.
    ref_f32 = jax.block_until_ready(reference_forward(x, tparams, jnp.float32))
    assert jnp.allclose(out, ref_f32, rtol=3e-2, atol=3e-2), (out, ref_f32)

    print("KERNEL_OK")
</pallas_src>

<mosaic_0001>
module attributes {stable_mosaic.version = 11 : i64} {
  func.func @lstm_kernel(%arg0: memref<64x1xf32, #tpu.memory_space<vmem>>, %arg1: memref<192x256xbf16, #tpu.memory_space<vmem>>, %arg2: memref<8x256xf32, #tpu.memory_space<vmem>>, %arg3: memref<8x1xf32, #tpu.memory_space<vmem>>) attributes {dimension_semantics = [], scalar_prefetch = 0 : i64, scratch_operands = 0 : i64, tpu.core_type = #tpu.core_type<tc>} {
    %c0 = arith.constant 0 : index
    %c0_0 = arith.constant 0 : index
    %0 = vector.load %arg2[%c0, %c0_0] : memref<8x256xf32, #tpu.memory_space<vmem>>, vector<8x256xf32>
    %1 = vector.extract_strided_slice %0 {offsets = [0, 0], sizes = [1, 256], strides = [1, 1]} : vector<8x256xf32> to vector<1x256xf32>
    %2 = vector.extract_strided_slice %0 {offsets = [1, 0], sizes = [1, 256], strides = [1, 1]} : vector<8x256xf32> to vector<1x256xf32>
    %3 = vector.extract_strided_slice %0 {offsets = [2, 0], sizes = [1, 256], strides = [1, 1]} : vector<8x256xf32> to vector<1x256xf32>
    %4 = vector.shape_cast %3 : vector<1x256xf32> to vector<1x256xf32>
    %5 = vector.broadcast %4 : vector<1x256xf32> to vector<8x256xf32>
    %c0_1 = arith.constant 0 : index
    %c0_2 = arith.constant 0 : index
    %6 = vector.load %arg1[%c0_1, %c0_2] : memref<192x256xbf16, #tpu.memory_space<vmem>>, vector<192x256xbf16>
    %7 = vector.extract_strided_slice %6 {offsets = [0, 0], sizes = [64, 256], strides = [1, 1]} : vector<192x256xbf16> to vector<64x256xbf16>
    %8 = vector.extract_strided_slice %6 {offsets = [64, 0], sizes = [64, 256], strides = [1, 1]} : vector<192x256xbf16> to vector<64x256xbf16>
    %9 = vector.extract_strided_slice %6 {offsets = [128, 0], sizes = [64, 256], strides = [1, 1]} : vector<192x256xbf16> to vector<64x256xbf16>
    %c0_3 = arith.constant 0 : index
    %c0_4 = arith.constant 0 : index
    %10 = vector.load %arg0[%c0_3, %c0_4] : memref<64x1xf32, #tpu.memory_space<vmem>>, vector<64x1xf32>
    %11 = vector.broadcast %10 : vector<64x1xf32> to vector<64x256xf32>
    %12 = vector.broadcast %1 : vector<1x256xf32> to vector<64x256xf32>
    %13 = arith.mulf %11, %12 : vector<64x256xf32>
    %14 = vector.broadcast %2 : vector<1x256xf32> to vector<64x256xf32>
    %15 = arith.addf %13, %14 : vector<64x256xf32>
    %cst = arith.constant 0.000000e+00 : f32
    %16 = vector.broadcast %cst : f32 to vector<8x64xf32>
    %17 = vector.extract_strided_slice %15 {offsets = [0, 0], sizes = [8, 256], strides = [1, 1]} : vector<64x256xf32> to vector<8x256xf32>
    %18 = arith.truncf %16 : vector<8x64xf32> to vector<8x64xbf16>
    %cst_5 = arith.constant dense<0.000000e+00> : vector<8x256xf32>
    %19 = tpu.matmul %18, %7, %cst_5 {dimension_numbers = #tpu.dot_dimension_numbers<[1], [0], [0], [1], [0, 0, 1, 1], [], []>} : vector<8x64xbf16>, vector<64x256xbf16>, vector<8x256xf32> -> vector<8x256xf32>
    %20 = arith.addf %17, %19 : vector<8x256xf32>
    %21 = vector.extract_strided_slice %20 {offsets = [0, 0], sizes = [8, 192], strides = [1, 1]} : vector<8x256xf32> to vector<8x192xf32>
    %22 = arith.negf %21 : vector<8x192xf32>
    %23 = math.exp %22 : vector<8x192xf32>
    %cst_6 = arith.constant 1.000000e+00 : f32
    %24 = vector.broadcast %cst_6 : f32 to vector<8x192xf32>
    %25 = arith.addf %24, %23 : vector<8x192xf32>
    %26 = arith.divf %24, %25 : vector<8x192xf32>
    %27 = vector.extract_strided_slice %20 {offsets = [0, 192], sizes = [8, 64], strides = [1, 1]} : vector<8x256xf32> to vector<8x64xf32>
    %28 = math.tanh %27 : vector<8x64xf32>
    %29 = vector.extract_strided_slice %26 {offsets = [0, 64], sizes = [8, 64], strides = [1, 1]} : vector<8x192xf32> to vector<8x64xf32>
    %30 = arith.mulf %29, %16 : vector<8x64xf32>
    %31 = vector.extract_strided_slice %26 {offsets = [0, 0], sizes = [8, 64], strides = [1, 1]} : vector<8x192xf32> to vector<8x64xf32>
    %32 = arith.mulf %31, %28 : vector<8x64xf32>
    %33 = arith.addf %30, %32 : vector<8x64xf32>
    %34 = vector.extract_strided_slice %26 {offsets = [0, 128], sizes = [8, 64], strides = [1, 1]} : vector<8x192xf32> to vector<8x64xf32>
    %35 = math.tanh %33 : vector<8x64xf32>
    %36 = arith.mulf %34, %35 : vector<8x64xf32>
    %37 = arith.truncf %36 : vector<8x64xf32> to vector<8x64xbf16>
    %cst_7 = arith.constant dense<0.000000e+00> : vector<8x256xf32>
    %38 = tpu.matmul %37, %8, %cst_7 {dimension_numbers = #tpu.dot_dimension_numbers<[1], [0], [0], [1], [0, 0, 1, 1], [], []>} : vector<8x64xbf16>, vector<64x256xbf16>, vector<8x256xf32> -> vector<8x256xf32>
    %39 = arith.truncf %16 : vector<8x64xf32> to vector<8x64xbf16>
    %cst_8 = arith.constant dense<0.000000e+00> : vector<8x256xf32>
    %40 = tpu.matmul %39, %9, %cst_8 {dimension_numbers = #tpu.dot_dimension_numbers<[1], [0], [0], [1], [0, 0, 1, 1], [], []>} : vector<8x64xbf16>, vector<64x256xbf16>, vector<8x256xf32> -> vector<8x256xf32>
    %41 = arith.addf %38, %40 : vector<8x256xf32>
    %42 = arith.addf %41, %5 : vector<8x256xf32>
    %43 = vector.extract_strided_slice %42 {offsets = [0, 0], sizes = [8, 192], strides = [1, 1]} : vector<8x256xf32> to vector<8x192xf32>
    %44 = arith.negf %43 : vector<8x192xf32>
    %45 = math.exp %44 : vector<8x192xf32>
    %cst_9 = arith.constant 1.000000e+00 : f32
    %46 = vector.broadcast %cst_9 : f32 to vector<8x192xf32>
    %47 = arith.addf %46, %45 : vector<8x192xf32>
    %48 = arith.divf %46, %47 : vector<8x192xf32>
    %49 = vector.extract_strided_slice %42 {offsets = [0, 192], sizes = [8, 64], strides = [1, 1]} : vector<8x256xf32> to vector<8x64xf32>
    %50 = math.tanh %49 : vector<8x64xf32>
    %51 = vector.extract_strided_slice %48 {offsets = [0, 64], sizes = [8, 64], strides = [1, 1]} : vector<8x192xf32> to vector<8x64xf32>
    %52 = arith.mulf %51, %16 : vector<8x64xf32>
    %53 = vector.extract_strided_slice %48 {offsets = [0, 0], sizes = [8, 64], strides = [1, 1]} : vector<8x192xf32> to vector<8x64xf32>
    %54 = arith.mulf %53, %50 : vector<8x64xf32>
    %55 = arith.addf %52, %54 : vector<8x64xf32>
    %56 = vector.extract_strided_slice %48 {offsets = [0, 128], sizes = [8, 64], strides = [1, 1]} : vector<8x192xf32> to vector<8x64xf32>
    %57 = math.tanh %55 : vector<8x64xf32>
    %58 = arith.mulf %56, %57 : vector<8x64xf32>
    %59 = vector.extract_strided_slice %15 {offsets = [8, 0], sizes = [8, 256], strides = [1, 1]} : vector<64x256xf32> to vector<8x256xf32>
    %60 = arith.truncf %36 : vector<8x64xf32> to vector<8x64xbf16>
    %cst_10 = arith.constant dense<0.000000e+00> : vector<8x256xf32>
    %61 = tpu.matmul %60, %7, %cst_10 {dimension_numbers = #tpu.dot_dimension_numbers<[1], [0], [0], [1], [0, 0, 1, 1], [], []>} : vector<8x64xbf16>, vector<64x256xbf16>, vector<8x256xf32> -> vector<8x256xf32>
    %62 = arith.addf %59, %61 : vector<8x256xf32>
    %63 = vector.extract_strided_slice %62 {offsets = [0, 0], sizes = [8, 192], strides = [1, 1]} : vector<8x256xf32> to vector<8x192xf32>
    %64 = arith.negf %63 : vector<8x192xf32>
    %65 = math.exp %64 : vector<8x192xf32>
    %cst_11 = arith.constant 1.000000e+00 : f32
    %66 = vector.broadcast %cst_11 : f32 to vector<8x192xf32>
    %67 = arith.addf %66, %65 : vector<8x192xf32>
    %68 = arith.divf %66, %67 : vector<8x192xf32>
    %69 = vector.extract_strided_slice %62 {offsets = [0, 192], sizes = [8, 64], strides = [1, 1]} : vector<8x256xf32> to vector<8x64xf32>
    %70 = math.tanh %69 : vector<8x64xf32>
    %71 = vector.extract_strided_slice %68 {offsets = [0, 64], sizes = [8, 64], strides = [1, 1]} : vector<8x192xf32> to vector<8x64xf32>
    %72 = arith.mulf %71, %33 : vector<8x64xf32>
    %73 = vector.extract_strided_slice %68 {offsets = [0, 0], sizes = [8, 64], strides = [1, 1]} : vector<8x192xf32> to vector<8x64xf32>
    %74 = arith.mulf %73, %70 : vector<8x64xf32>
    %75 = arith.addf %72, %74 : vector<8x64xf32>
    %76 = vector.extract_strided_slice %68 {offsets = [0, 128], sizes = [8, 64], strides = [1, 1]} : vector<8x192xf32> to vector<8x64xf32>
    %77 = math.tanh %75 : vector<8x64xf32>
    %78 = arith.mulf %76, %77 : vector<8x64xf32>
    %79 = arith.truncf %78 : vector<8x64xf32> to vector<8x64xbf16>
    %cst_12 = arith.constant dense<0.000000e+00> : vector<8x256xf32>
    %80 = tpu.matmul %79, %8, %cst_12 {dimension_numbers = #tpu.dot_dimension_numbers<[1], [0], [0], [1], [0, 0, 1, 1], [], []>} : vector<8x64xbf16>, vector<64x256xbf16>, vector<8x256xf32> -> vector<8x256xf32>
    %81 = arith.truncf %58 : vector<8x64xf32> to vector<8x64xbf16>
    %cst_13 = arith.constant dense<0.000000e+00> : vector<8x256xf32>
    %82 = tpu.matmul %81, %9, %cst_13 {dimension_numbers = #tpu.dot_dimension_numbers<[1], [0], [0], [1], [0, 0, 1, 1], [], []>} : vector<8x64xbf16>, vector<64x256xbf16>, vector<8x256xf32> -> vector<8x256xf32>
    %83 = arith.addf %80, %82 : vector<8x256xf32>
    %84 = arith.addf %83, %5 : vector<8x256xf32>
    %85 = vector.extract_strided_slice %84 {offsets = [0, 0], sizes = [8, 192], strides = [1, 1]} : vector<8x256xf32> to vector<8x192xf32>
    %86 = arith.negf %85 : vector<8x192xf32>
    %87 = math.exp %86 : vector<8x192xf32>
    %cst_14 = arith.constant 1.000000e+00 : f32
    %88 = vector.broadcast %cst_14 : f32 to vector<8x192xf32>
    %89 = arith.addf %88, %87 : vector<8x192xf32>
    %90 = arith.divf %88, %89 : vector<8x192xf32>
    %91 = vector.extract_strided_slice %84 {offsets = [0, 192], sizes = [8, 64], strides = [1, 1]} : vector<8x256xf32> to vector<8x64xf32>
    %92 = math.tanh %91 : vector<8x64xf32>
    %93 = vector.extract_strided_slice %90 {offsets = [0, 64], sizes = [8, 64], strides = [1, 1]} : vector<8x192xf32> to vector<8x64xf32>
    %94 = arith.mulf %93, %55 : vector<8x64xf32>
    %95 = vector.extract_strided_slice %90 {offsets = [0, 0], sizes = [8, 64], strides = [1, 1]} : vector<8x192xf32> to vector<8x64xf32>
    %96 = arith.mulf %95, %92 : vector<8x64xf32>
    %97 = arith.addf %94, %96 : vector<8x64xf32>
    %98 = vector.extract_strided_slice %90 {offsets = [0, 128], sizes = [8, 64], strides = [1, 1]} : vector<8x192xf32> to vector<8x64xf32>
    %99 = math.tanh %97 : vector<8x64xf32>
    %100 = arith.mulf %98, %99 : vector<8x64xf32>
    %101 = vector.extract_strided_slice %15 {offsets = [16, 0], sizes = [8, 256], strides = [1, 1]} : vector<64x256xf32> to vector<8x256xf32>
    %102 = arith.truncf %78 : vector<8x64xf32> to vector<8x64xbf16>
    %cst_15 = arith.constant dense<0.000000e+00> : vector<8x256xf32>
    %103 = tpu.matmul %102, %7, %cst_15 {dimension_numbers = #tpu.dot_dimension_numbers<[1], [0], [0], [1], [0, 0, 1, 1], [], []>} : vector<8x64xbf16>, vector<64x256xbf16>, vector<8x256xf32> -> vector<8x256xf32>
    %104 = arith.addf %101, %103 : vector<8x256xf32>
    %105 = vector.extract_strided_slice %104 {offsets = [0, 0], sizes = [8, 192], strides = [1, 1]} : vector<8x256xf32> to vector<8x192xf32>
    %106 = arith.negf %105 : vector<8x192xf32>
    %107 = math.exp %106 : vector<8x192xf32>
    %cst_16 = arith.constant 1.000000e+00 : f32
    %108 = vector.broadcast %cst_16 : f32 to vector<8x192xf32>
    %109 = arith.addf %108, %107 : vector<8x192xf32>
    %110 = arith.divf %108, %109 : vector<8x192xf32>
    %111 = vector.extract_strided_slice %104 {offsets = [0, 192], sizes = [8, 64], strides = [1, 1]} : vector<8x256xf32> to vector<8x64xf32>
    %112 = math.tanh %111 : vector<8x64xf32>
    %113 = vector.extract_strided_slice %110 {offsets = [0, 64], sizes = [8, 64], strides = [1, 1]} : vector<8x192xf32> to vector<8x64xf32>
    %114 = arith.mulf %113, %75 : vector<8x64xf32>
    %115 = vector.extract_strided_slice %110 {offsets = [0, 0], sizes = [8, 64], strides = [1, 1]} : vector<8x192xf32> to vector<8x64xf32>
    %116 = arith.mulf %115, %112 : vector<8x64xf32>
    %117 = arith.addf %114, %116 : vector<8x64xf32>
    %118 = vector.extract_strided_slice %110 {offsets = [0, 128], sizes = [8, 64], strides = [1, 1]} : vector<8x192xf32> to vector<8x64xf32>
    %119 = math.tanh %117 : vector<8x64xf32>
    %120 = arith.mulf %118, %119 : vector<8x64xf32>
    %121 = arith.truncf %120 : vector<8x64xf32> to vector<8x64xbf16>
    %cst_17 = arith.constant dense<0.000000e+00> : vector<8x256xf32>
    %122 = tpu.matmul %121, %8, %cst_17 {dimension_numbers = #tpu.dot_dimension_numbers<[1], [0], [0], [1], [0, 0, 1, 1], [], []>} : vector<8x64xbf16>, vector<64x256xbf16>, vector<8x256xf32> -> vector<8x256xf32>
    %123 = arith.truncf %100 : vector<8x64xf32> to vector<8x64xbf16>
    %cst_18 = arith.constant dense<0.000000e+00> : vector<8x256xf32>
    %124 = tpu.matmul %123, %9, %cst_18 {dimension_numbers = #tpu.dot_dimension_numbers<[1], [0], [0], [1], [0, 0, 1, 1], [], []>} : vector<8x64xbf16>, vector<64x256xbf16>, vector<8x256xf32> -> vector<8x256xf32>
    %125 = arith.addf %122, %124 : vector<8x256xf32>
    %126 = arith.addf %125, %5 : vector<8x256xf32>
    %127 = vector.extract_strided_slice %126 {offsets = [0, 0], sizes = [8, 192], strides = [1, 1]} : vector<8x256xf32> to vector<8x192xf32>
    %128 = arith.negf %127 : vector<8x192xf32>
    %129 = math.exp %128 : vector<8x192xf32>
    %cst_19 = arith.constant 1.000000e+00 : f32
    %130 = vector.broadcast %cst_19 : f32 to vector<8x192xf32>
    %131 = arith.addf %130, %129 : vector<8x192xf32>
    %132 = arith.divf %130, %131 : vector<8x192xf32>
    %133 = vector.extract_strided_slice %126 {offsets = [0, 192], sizes = [8, 64], strides = [1, 1]} : vector<8x256xf32> to vector<8x64xf32>
    %134 = math.tanh %133 : vector<8x64xf32>
    %135 = vector.extract_strided_slice %132 {offsets = [0, 64], sizes = [8, 64], strides = [1, 1]} : vector<8x192xf32> to vector<8x64xf32>
    %136 = arith.mulf %135, %97 : vector<8x64xf32>
    %137 = vector.extract_strided_slice %132 {offsets = [0, 0], sizes = [8, 64], strides = [1, 1]} : vector<8x192xf32> to vector<8x64xf32>
    %138 = arith.mulf %137, %134 : vector<8x64xf32>
    %139 = arith.addf %136, %138 : vector<8x64xf32>
    %140 = vector.extract_strided_slice %132 {offsets = [0, 128], sizes = [8, 64], strides = [1, 1]} : vector<8x192xf32> to vector<8x64xf32>
    %141 = math.tanh %139 : vector<8x64xf32>
    %142 = arith.mulf %140, %141 : vector<8x64xf32>
    %143 = vector.extract_strided_slice %15 {offsets = [24, 0], sizes = [8, 256], strides = [1, 1]} : vector<64x256xf32> to vector<8x256xf32>
    %144 = arith.truncf %120 : vector<8x64xf32> to vector<8x64xbf16>
    %cst_20 = arith.constant dense<0.000000e+00> : vector<8x256xf32>
    %145 = tpu.matmul %144, %7, %cst_20 {dimension_numbers = #tpu.dot_dimension_numbers<[1], [0], [0], [1], [0, 0, 1, 1], [], []>} : vector<8x64xbf16>, vector<64x256xbf16>, vector<8x256xf32> -> vector<8x256xf32>
    %146 = arith.addf %143, %145 : vector<8x256xf32>
    %147 = vector.extract_strided_slice %146 {offsets = [0, 0], sizes = [8, 192], strides = [1, 1]} : vector<8x256xf32> to vector<8x192xf32>
    %148 = arith.negf %147 : vector<8x192xf32>
    %149 = math.exp %148 : vector<8x192xf32>
    %cst_21 = arith.constant 1.000000e+00 : f32
    %150 = vector.broadcast %cst_21 : f32 to vector<8x192xf32>
    %151 = arith.addf %150, %149 : vector<8x192xf32>
    %152 = arith.divf %150, %151 : vector<8x192xf32>
    %153 = vector.extract_strided_slice %146 {offsets = [0, 192], sizes = [8, 64], strides = [1, 1]} : vector<8x256xf32> to vector<8x64xf32>
    %154 = math.tanh %153 : vector<8x64xf32>
    %155 = vector.extract_strided_slice %152 {offsets = [0, 64], sizes = [8, 64], strides = [1, 1]} : vector<8x192xf32> to vector<8x64xf32>
    %156 = arith.mulf %155, %117 : vector<8x64xf32>
    %157 = vector.extract_strided_slice %152 {offsets = [0, 0], sizes = [8, 64], strides = [1, 1]} : vector<8x192xf32> to vector<8x64xf32>
    %158 = arith.mulf %157, %154 : vector<8x64xf32>
    %159 = arith.addf %156, %158 : vector<8x64xf32>
    %160 = vector.extract_strided_slice %152 {offsets = [0, 128], sizes = [8, 64], strides = [1, 1]} : vector<8x192xf32> to vector<8x64xf32>
    %161 = math.tanh %159 : vector<8x64xf32>
    %162 = arith.mulf %160, %161 : vector<8x64xf32>
    %163 = arith.truncf %162 : vector<8x64xf32> to vector<8x64xbf16>
    %cst_22 = arith.constant dense<0.000000e+00> : vector<8x256xf32>
    %164 = tpu.matmul %163, %8, %cst_22 {dimension_numbers = #tpu.dot_dimension_numbers<[1], [0], [0], [1], [0, 0, 1, 1], [], []>} : vector<8x64xbf16>, vector<64x256xbf16>, vector<8x256xf32> -> vector<8x256xf32>
    %165 = arith.truncf %142 : vector<8x64xf32> to vector<8x64xbf16>
    %cst_23 = arith.constant dense<0.000000e+00> : vector<8x256xf32>
    %166 = tpu.matmul %165, %9, %cst_23 {dimension_numbers = #tpu.dot_dimension_numbers<[1], [0], [0], [1], [0, 0, 1, 1], [], []>} : vector<8x64xbf16>, vector<64x256xbf16>, vector<8x256xf32> -> vector<8x256xf32>
    %167 = arith.addf %164, %166 : vector<8x256xf32>
    %168 = arith.addf %167, %5 : vector<8x256xf32>
    %169 = vector.extract_strided_slice %168 {offsets = [0, 0], sizes = [8, 192], strides = [1, 1]} : vector<8x256xf32> to vector<8x192xf32>
    %170 = arith.negf %169 : vector<8x192xf32>
    %171 = math.exp %170 : vector<8x192xf32>
    %cst_24 = arith.constant 1.000000e+00 : f32
    %172 = vector.broadcast %cst_24 : f32 to vector<8x192xf32>
    %173 = arith.addf %172, %171 : vector<8x192xf32>
    %174 = arith.divf %172, %173 : vector<8x192xf32>
    %175 = vector.extract_strided_slice %168 {offsets = [0, 192], sizes = [8, 64], strides = [1, 1]} : vector<8x256xf32> to vector<8x64xf32>
    %176 = math.tanh %175 : vector<8x64xf32>
    %177 = vector.extract_strided_slice %174 {offsets = [0, 64], sizes = [8, 64], strides = [1, 1]} : vector<8x192xf32> to vector<8x64xf32>
    %178 = arith.mulf %177, %139 : vector<8x64xf32>
    %179 = vector.extract_strided_slice %174 {offsets = [0, 0], sizes = [8, 64], strides = [1, 1]} : vector<8x192xf32> to vector<8x64xf32>
    %180 = arith.mulf %179, %176 : vector<8x64xf32>
    %181 = arith.addf %178, %180 : vector<8x64xf32>
    %182 = vector.extract_strided_slice %174 {offsets = [0, 128], sizes = [8, 64], strides = [1, 1]} : vector<8x192xf32> to vector<8x64xf32>
    %183 = math.tanh %181 : vector<8x64xf32>
    %184 = arith.mulf %182, %183 : vector<8x64xf32>
    %185 = vector.extract_strided_slice %15 {offsets = [32, 0], sizes = [8, 256], strides = [1, 1]} : vector<64x256xf32> to vector<8x256xf32>
    %186 = arith.truncf %162 : vector<8x64xf32> to vector<8x64xbf16>
    %cst_25 = arith.constant dense<0.000000e+00> : vector<8x256xf32>
    %187 = tpu.matmul %186, %7, %cst_25 {dimension_numbers = #tpu.dot_dimension_numbers<[1], [0], [0], [1], [0, 0, 1, 1], [], []>} : vector<8x64xbf16>, vector<64x256xbf16>, vector<8x256xf32> -> vector<8x256xf32>
    %188 = arith.addf %185, %187 : vector<8x256xf32>
    %189 = vector.extract_strided_slice %188 {offsets = [0, 0], sizes = [8, 192], strides = [1, 1]} : vector<8x256xf32> to vector<8x192xf32>
    %190 = arith.negf %189 : vector<8x192xf32>
    %191 = math.exp %190 : vector<8x192xf32>
    %cst_26 = arith.constant 1.000000e+00 : f32
    %192 = vector.broadcast %cst_26 : f32 to vector<8x192xf32>
    %193 = arith.addf %192, %191 : vector<8x192xf32>
    %194 = arith.divf %192, %193 : vector<8x192xf32>
    %195 = vector.extract_strided_slice %188 {offsets = [0, 192], sizes = [8, 64], strides = [1, 1]} : vector<8x256xf32> to vector<8x64xf32>
    %196 = math.tanh %195 : vector<8x64xf32>
    %197 = vector.extract_strided_slice %194 {offsets = [0, 64], sizes = [8, 64], strides = [1, 1]} : vector<8x192xf32> to vector<8x64xf32>
    %198 = arith.mulf %197, %159 : vector<8x64xf32>
    %199 = vector.extract_strided_slice %194 {offsets = [0, 0], sizes = [8, 64], strides = [1, 1]} : vector<8x192xf32> to vector<8x64xf32>
    %200 = arith.mulf %199, %196 : vector<8x64xf32>
    %201 = arith.addf %198, %200 : vector<8x64xf32>
    %202 = vector.extract_strided_slice %194 {offsets = [0, 128], sizes = [8, 64], strides = [1, 1]} : vector<8x192xf32> to vector<8x64xf32>
    %203 = math.tanh %201 : vector<8x64xf32>
    %204 = arith.mulf %202, %203 : vector<8x64xf32>
    %205 = arith.truncf %204 : vector<8x64xf32> to vector<8x64xbf16>
    %cst_27 = arith.constant dense<0.000000e+00> : vector<8x256xf32>
    %206 = tpu.matmul %205, %8, %cst_27 {dimension_numbers = #tpu.dot_dimension_numbers<[1], [0], [0], [1], [0, 0, 1, 1], [], []>} : vector<8x64xbf16>, vector<64x256xbf16>, vector<8x256xf32> -> vector<8x256xf32>
    %207 = arith.truncf %184 : vector<8x64xf32> to vector<8x64xbf16>
    %cst_28 = arith.constant dense<0.000000e+00> : vector<8x256xf32>
    %208 = tpu.matmul %207, %9, %cst_28 {dimension_numbers = #tpu.dot_dimension_numbers<[1], [0], [0], [1], [0, 0, 1, 1], [], []>} : vector<8x64xbf16>, vector<64x256xbf16>, vector<8x256xf32> -> vector<8x256xf32>
    %209 = arith.addf %206, %208 : vector<8x256xf32>
    %210 = arith.addf %209, %5 : vector<8x256xf32>
    %211 = vector.extract_strided_slice %210 {offsets = [0, 0], sizes = [8, 192], strides = [1, 1]} : vector<8x256xf32> to vector<8x192xf32>
    %212 = arith.negf %211 : vector<8x192xf32>
    %213 = math.exp %212 : vector<8x192xf32>
    %cst_29 = arith.constant 1.000000e+00 : f32
    %214 = vector.broadcast %cst_29 : f32 to vector<8x192xf32>
    %215 = arith.addf %214, %213 : vector<8x192xf32>
    %216 = arith.divf %214, %215 : vector<8x192xf32>
    %217 = vector.extract_strided_slice %210 {offsets = [0, 192], sizes = [8, 64], strides = [1, 1]} : vector<8x256xf32> to vector<8x64xf32>
    %218 = math.tanh %217 : vector<8x64xf32>
    %219 = vector.extract_strided_slice %216 {offsets = [0, 64], sizes = [8, 64], strides = [1, 1]} : vector<8x192xf32> to vector<8x64xf32>
    %220 = arith.mulf %219, %181 : vector<8x64xf32>
    %221 = vector.extract_strided_slice %216 {offsets = [0, 0], sizes = [8, 64], strides = [1, 1]} : vector<8x192xf32> to vector<8x64xf32>
    %222 = arith.mulf %221, %218 : vector<8x64xf32>
    %223 = arith.addf %220, %222 : vector<8x64xf32>
    %224 = vector.extract_strided_slice %216 {offsets = [0, 128], sizes = [8, 64], strides = [1, 1]} : vector<8x192xf32> to vector<8x64xf32>
    %225 = math.tanh %223 : vector<8x64xf32>
    %226 = arith.mulf %224, %225 : vector<8x64xf32>
    %227 = vector.extract_strided_slice %15 {offsets = [40, 0], sizes = [8, 256], strides = [1, 1]} : vector<64x256xf32> to vector<8x256xf32>
    %228 = arith.truncf %204 : vector<8x64xf32> to vector<8x64xbf16>
    %cst_30 = arith.constant dense<0.000000e+00> : vector<8x256xf32>
    %229 = tpu.matmul %228, %7, %cst_30 {dimension_numbers = #tpu.dot_dimension_numbers<[1], [0], [0], [1], [0, 0, 1, 1], [], []>} : vector<8x64xbf16>, vector<64x256xbf16>, vector<8x256xf32> -> vector<8x256xf32>
    %230 = arith.addf %227, %229 : vector<8x256xf32>
    %231 = vector.extract_strided_slice %230 {offsets = [0, 0], sizes = [8, 192], strides = [1, 1]} : vector<8x256xf32> to vector<8x192xf32>
    %232 = arith.negf %231 : vector<8x192xf32>
    %233 = math.exp %232 : vector<8x192xf32>
    %cst_31 = arith.constant 1.000000e+00 : f32
    %234 = vector.broadcast %cst_31 : f32 to vector<8x192xf32>
    %235 = arith.addf %234, %233 : vector<8x192xf32>
    %236 = arith.divf %234, %235 : vector<8x192xf32>
    %237 = vector.extract_strided_slice %230 {offsets = [0, 192], sizes = [8, 64], strides = [1, 1]} : vector<8x256xf32> to vector<8x64xf32>
    %238 = math.tanh %237 : vector<8x64xf32>
    %239 = vector.extract_strided_slice %236 {offsets = [0, 64], sizes = [8, 64], strides = [1, 1]} : vector<8x192xf32> to vector<8x64xf32>
    %240 = arith.mulf %239, %201 : vector<8x64xf32>
    %241 = vector.extract_strided_slice %236 {offsets = [0, 0], sizes = [8, 64], strides = [1, 1]} : vector<8x192xf32> to vector<8x64xf32>
    %242 = arith.mulf %241, %238 : vector<8x64xf32>
    %243 = arith.addf %240, %242 : vector<8x64xf32>
    %244 = vector.extract_strided_slice %236 {offsets = [0, 128], sizes = [8, 64], strides = [1, 1]} : vector<8x192xf32> to vector<8x64xf32>
    %245 = math.tanh %243 : vector<8x64xf32>
    %246 = arith.mulf %244, %245 : vector<8x64xf32>
    %247 = arith.truncf %246 : vector<8x64xf32> to vector<8x64xbf16>
    %cst_32 = arith.constant dense<0.000000e+00> : vector<8x256xf32>
    %248 = tpu.matmul %247, %8, %cst_32 {dimension_numbers = #tpu.dot_dimension_numbers<[1], [0], [0], [1], [0, 0, 1, 1], [], []>} : vector<8x64xbf16>, vector<64x256xbf16>, vector<8x256xf32> -> vector<8x256xf32>
    %249 = arith.truncf %226 : vector<8x64xf32> to vector<8x64xbf16>
    %cst_33 = arith.constant dense<0.000000e+00> : vector<8x256xf32>
    %250 = tpu.matmul %249, %9, %cst_33 {dimension_numbers = #tpu.dot_dimension_numbers<[1], [0], [0], [1], [0, 0, 1, 1], [], []>} : vector<8x64xbf16>, vector<64x256xbf16>, vector<8x256xf32> -> vector<8x256xf32>
    %251 = arith.addf %248, %250 : vector<8x256xf32>
    %252 = arith.addf %251, %5 : vector<8x256xf32>
    %253 = vector.extract_strided_slice %252 {offsets = [0, 0], sizes = [8, 192], strides = [1, 1]} : vector<8x256xf32> to vector<8x192xf32>
    %254 = arith.negf %253 : vector<8x192xf32>
    %255 = math.exp %254 : vector<8x192xf32>
    %cst_34 = arith.constant 1.000000e+00 : f32
    %256 = vector.broadcast %cst_34 : f32 to vector<8x192xf32>
    %257 = arith.addf %256, %255 : vector<8x192xf32>
    %258 = arith.divf %256, %257 : vector<8x192xf32>
    %259 = vector.extract_strided_slice %252 {offsets = [0, 192], sizes = [8, 64], strides = [1, 1]} : vector<8x256xf32> to vector<8x64xf32>
    %260 = math.tanh %259 : vector<8x64xf32>
    %261 = vector.extract_strided_slice %258 {offsets = [0, 64], sizes = [8, 64], strides = [1, 1]} : vector<8x192xf32> to vector<8x64xf32>
    %262 = arith.mulf %261, %223 : vector<8x64xf32>
    %263 = vector.extract_strided_slice %258 {offsets = [0, 0], sizes = [8, 64], strides = [1, 1]} : vector<8x192xf32> to vector<8x64xf32>
    %264 = arith.mulf %263, %260 : vector<8x64xf32>
    %265 = arith.addf %262, %264 : vector<8x64xf32>
    %266 = vector.extract_strided_slice %258 {offsets = [0, 128], sizes = [8, 64], strides = [1, 1]} : vector<8x192xf32> to vector<8x64xf32>
    %267 = math.tanh %265 : vector<8x64xf32>
    %268 = arith.mulf %266, %267 : vector<8x64xf32>
    %269 = vector.extract_strided_slice %15 {offsets = [48, 0], sizes = [8, 256], strides = [1, 1]} : vector<64x256xf32> to vector<8x256xf32>
    %270 = arith.truncf %246 : vector<8x64xf32> to vector<8x64xbf16>
    %cst_35 = arith.constant dense<0.000000e+00> : vector<8x256xf32>
    %271 = tpu.matmul %270, %7, %cst_35 {dimension_numbers = #tpu.dot_dimension_numbers<[1], [0], [0], [1], [0, 0, 1, 1], [], []>} : vector<8x64xbf16>, vector<64x256xbf16>, vector<8x256xf32> -> vector<8x256xf32>
    %272 = arith.addf %269, %271 : vector<8x256xf32>
    %273 = vector.extract_strided_slice %272 {offsets = [0, 0], sizes = [8, 192], strides = [1, 1]} : vector<8x256xf32> to vector<8x192xf32>
    %274 = arith.negf %273 : vector<8x192xf32>
    %275 = math.exp %274 : vector<8x192xf32>
    %cst_36 = arith.constant 1.000000e+00 : f32
    %276 = vector.broadcast %cst_36 : f32 to vector<8x192xf32>
    %277 = arith.addf %276, %275 : vector<8x192xf32>
    %278 = arith.divf %276, %277 : vector<8x192xf32>
    %279 = vector.extract_strided_slice %272 {offsets = [0, 192], sizes = [8, 64], strides = [1, 1]} : vector<8x256xf32> to vector<8x64xf32>
    %280 = math.tanh %279 : vector<8x64xf32>
    %281 = vector.extract_strided_slice %278 {offsets = [0, 64], sizes = [8, 64], strides = [1, 1]} : vector<8x192xf32> to vector<8x64xf32>
    %282 = arith.mulf %281, %243 : vector<8x64xf32>
    %283 = vector.extract_strided_slice %278 {offsets = [0, 0], sizes = [8, 64], strides = [1, 1]} : vector<8x192xf32> to vector<8x64xf32>
    %284 = arith.mulf %283, %280 : vector<8x64xf32>
    %285 = arith.addf %282, %284 : vector<8x64xf32>
    %286 = vector.extract_strided_slice %278 {offsets = [0, 128], sizes = [8, 64], strides = [1, 1]} : vector<8x192xf32> to vector<8x64xf32>
    %287 = math.tanh %285 : vector<8x64xf32>
    %288 = arith.mulf %286, %287 : vector<8x64xf32>
    %289 = arith.truncf %288 : vector<8x64xf32> to vector<8x64xbf16>
    %cst_37 = arith.constant dense<0.000000e+00> : vector<8x256xf32>
    %290 = tpu.matmul %289, %8, %cst_37 {dimension_numbers = #tpu.dot_dimension_numbers<[1], [0], [0], [1], [0, 0, 1, 1], [], []>} : vector<8x64xbf16>, vector<64x256xbf16>, vector<8x256xf32> -> vector<8x256xf32>
    %291 = arith.truncf %268 : vector<8x64xf32> to vector<8x64xbf16>
    %cst_38 = arith.constant dense<0.000000e+00> : vector<8x256xf32>
    %292 = tpu.matmul %291, %9, %cst_38 {dimension_numbers = #tpu.dot_dimension_numbers<[1], [0], [0], [1], [0, 0, 1, 1], [], []>} : vector<8x64xbf16>, vector<64x256xbf16>, vector<8x256xf32> -> vector<8x256xf32>
    %293 = arith.addf %290, %292 : vector<8x256xf32>
    %294 = arith.addf %293, %5 : vector<8x256xf32>
    %295 = vector.extract_strided_slice %294 {offsets = [0, 0], sizes = [8, 192], strides = [1, 1]} : vector<8x256xf32> to vector<8x192xf32>
    %296 = arith.negf %295 : vector<8x192xf32>
    %297 = math.exp %296 : vector<8x192xf32>
    %cst_39 = arith.constant 1.000000e+00 : f32
    %298 = vector.broadcast %cst_39 : f32 to vector<8x192xf32>
    %299 = arith.addf %298, %297 : vector<8x192xf32>
    %300 = arith.divf %298, %299 : vector<8x192xf32>
    %301 = vector.extract_strided_slice %294 {offsets = [0, 192], sizes = [8, 64], strides = [1, 1]} : vector<8x256xf32> to vector<8x64xf32>
    %302 = math.tanh %301 : vector<8x64xf32>
    %303 = vector.extract_strided_slice %300 {offsets = [0, 64], sizes = [8, 64], strides = [1, 1]} : vector<8x192xf32> to vector<8x64xf32>
    %304 = arith.mulf %303, %265 : vector<8x64xf32>
    %305 = vector.extract_strided_slice %300 {offsets = [0, 0], sizes = [8, 64], strides = [1, 1]} : vector<8x192xf32> to vector<8x64xf32>
    %306 = arith.mulf %305, %302 : vector<8x64xf32>
    %307 = arith.addf %304, %306 : vector<8x64xf32>
    %308 = vector.extract_strided_slice %300 {offsets = [0, 128], sizes = [8, 64], strides = [1, 1]} : vector<8x192xf32> to vector<8x64xf32>
    %309 = math.tanh %307 : vector<8x64xf32>
    %310 = arith.mulf %308, %309 : vector<8x64xf32>
    %311 = vector.extract_strided_slice %15 {offsets = [56, 0], sizes = [8, 256], strides = [1, 1]} : vector<64x256xf32> to vector<8x256xf32>
    %312 = arith.truncf %288 : vector<8x64xf32> to vector<8x64xbf16>
    %cst_40 = arith.constant dense<0.000000e+00> : vector<8x256xf32>
    %313 = tpu.matmul %312, %7, %cst_40 {dimension_numbers = #tpu.dot_dimension_numbers<[1], [0], [0], [1], [0, 0, 1, 1], [], []>} : vector<8x64xbf16>, vector<64x256xbf16>, vector<8x256xf32> -> vector<8x256xf32>
    %314 = arith.addf %311, %313 : vector<8x256xf32>
    %315 = vector.extract_strided_slice %314 {offsets = [0, 0], sizes = [8, 192], strides = [1, 1]} : vector<8x256xf32> to vector<8x192xf32>
    %316 = arith.negf %315 : vector<8x192xf32>
    %317 = math.exp %316 : vector<8x192xf32>
    %cst_41 = arith.constant 1.000000e+00 : f32
    %318 = vector.broadcast %cst_41 : f32 to vector<8x192xf32>
    %319 = arith.addf %318, %317 : vector<8x192xf32>
    %320 = arith.divf %318, %319 : vector<8x192xf32>
    %321 = vector.extract_strided_slice %314 {offsets = [0, 192], sizes = [8, 64], strides = [1, 1]} : vector<8x256xf32> to vector<8x64xf32>
    %322 = math.tanh %321 : vector<8x64xf32>
    %323 = vector.extract_strided_slice %320 {offsets = [0, 64], sizes = [8, 64], strides = [1, 1]} : vector<8x192xf32> to vector<8x64xf32>
    %324 = arith.mulf %323, %285 : vector<8x64xf32>
    %325 = vector.extract_strided_slice %320 {offsets = [0, 0], sizes = [8, 64], strides = [1, 1]} : vector<8x192xf32> to vector<8x64xf32>
    %326 = arith.mulf %325, %322 : vector<8x64xf32>
    %327 = arith.addf %324, %326 : vector<8x64xf32>
    %328 = vector.extract_strided_slice %320 {offsets = [0, 128], sizes = [8, 64], strides = [1, 1]} : vector<8x192xf32> to vector<8x64xf32>
    %329 = math.tanh %327 : vector<8x64xf32>
    %330 = arith.mulf %328, %329 : vector<8x64xf32>
    %331 = arith.truncf %330 : vector<8x64xf32> to vector<8x64xbf16>
    %cst_42 = arith.constant dense<0.000000e+00> : vector<8x256xf32>
    %332 = tpu.matmul %331, %8, %cst_42 {dimension_numbers = #tpu.dot_dimension_numbers<[1], [0], [0], [1], [0, 0, 1, 1], [], []>} : vector<8x64xbf16>, vector<64x256xbf16>, vector<8x256xf32> -> vector<8x256xf32>
    %333 = arith.truncf %310 : vector<8x64xf32> to vector<8x64xbf16>
    %cst_43 = arith.constant dense<0.000000e+00> : vector<8x256xf32>
    %334 = tpu.matmul %333, %9, %cst_43 {dimension_numbers = #tpu.dot_dimension_numbers<[1], [0], [0], [1], [0, 0, 1, 1], [], []>} : vector<8x64xbf16>, vector<64x256xbf16>, vector<8x256xf32> -> vector<8x256xf32>
    %335 = arith.addf %332, %334 : vector<8x256xf32>
    %336 = arith.addf %335, %5 : vector<8x256xf32>
    %337 = vector.extract_strided_slice %336 {offsets = [0, 0], sizes = [8, 192], strides = [1, 1]} : vector<8x256xf32> to vector<8x192xf32>
    %338 = arith.negf %337 : vector<8x192xf32>
    %339 = math.exp %338 : vector<8x192xf32>
    %cst_44 = arith.constant 1.000000e+00 : f32
    %340 = vector.broadcast %cst_44 : f32 to vector<8x192xf32>
    %341 = arith.addf %340, %339 : vector<8x192xf32>
    %342 = arith.divf %340, %341 : vector<8x192xf32>
    %343 = vector.extract_strided_slice %336 {offsets = [0, 192], sizes = [8, 64], strides = [1, 1]} : vector<8x256xf32> to vector<8x64xf32>
    %344 = math.tanh %343 : vector<8x64xf32>
    %345 = vector.extract_strided_slice %342 {offsets = [0, 64], sizes = [8, 64], strides = [1, 1]} : vector<8x192xf32> to vector<8x64xf32>
    %346 = arith.mulf %345, %307 : vector<8x64xf32>
    %347 = vector.extract_strided_slice %342 {offsets = [0, 0], sizes = [8, 64], strides = [1, 1]} : vector<8x192xf32> to vector<8x64xf32>
    %348 = arith.mulf %347, %344 : vector<8x64xf32>
    %349 = arith.addf %346, %348 : vector<8x64xf32>
    %350 = vector.extract_strided_slice %342 {offsets = [0, 128], sizes = [8, 64], strides = [1, 1]} : vector<8x192xf32> to vector<8x64xf32>
    %351 = math.tanh %349 : vector<8x64xf32>
    %352 = arith.mulf %350, %351 : vector<8x64xf32>
    %353 = vector.extract_strided_slice %0 {offsets = [3, 0], sizes = [1, 64], strides = [1, 1]} : vector<8x256xf32> to vector<1x64xf32>
    %354 = vector.broadcast %353 : vector<1x64xf32> to vector<8x64xf32>
    %355 = arith.mulf %352, %354 : vector<8x64xf32>
    %cst_45 = arith.constant dense<0.000000e+00> : vector<8xf32>
    %356 = vector.multi_reduction <add>, %355, %cst_45 [1] : vector<8x64xf32> to vector<8xf32>
    %357 = vector.shape_cast %356 : vector<8xf32> to vector<8x1xf32>
    %358 = vector.extract_strided_slice %0 {offsets = [4, 0], sizes = [1, 1], strides = [1, 1]} : vector<8x256xf32> to vector<1x1xf32>
    %359 = vector.broadcast %358 : vector<1x1xf32> to vector<8x1xf32>
    %360 = arith.addf %357, %359 : vector<8x1xf32>
    %c0_46 = arith.constant 0 : index
    %c0_47 = arith.constant 0 : index
    %361 = vector.load %arg3[%c0_46, %c0_47] : memref<8x1xf32, #tpu.memory_space<vmem>>, vector<8x1xf32>
    tpu.vector_store %arg3[%c0_46, %c0_47], %360 {strides = array<i32>} : memref<8x1xf32, #tpu.memory_space<vmem>>, vector<8x1xf32>,
    return
  }
}

</mosaic_0001>

<llo_original>
// kernel: weather_lstm_forward.1
$region0: #{weather_lstm_forward.1}
  #allocation0 [shape = 'u32[]', space=smem, size = 0x4, offset = 0x4, fixed_abs, tag = 'smem constant byte address 0x4 - core index']
  #allocation1 [shape = 'u32[144,128]{1,0:T(1,128)}', space=vmem, size = 0x12000, scoped, tag = 'internal scratch']
  %s0 = inlined_call_operand.vmem [shape: f32[64,1], index: 0, kind: input, shape index: {}]
  %s1 = inlined_call_operand.hbm [shape: bf16[192,256], index: 1, kind: input, shape index: {}]
  %s2 = inlined_call_operand.vmem [shape: f32[8,256], index: 2, kind: input, shape index: {}]
  %s3 = inlined_call_operand.vmem [shape: f32[8,1], index: 3, kind: output, shape index: {}]
  %s4 = sld [smem:[#allocation0]]
  $region26: #{weather_lstm_forward.1} parent=0
    _
  %s6 = ssub.s32 1, %s4
  %s7 = scalar_select 0, %s6, %s4
  $region1: #{weather_lstm_forward.1} parent=0
    #allocation2 [shape = 'u8[98304]{0}', space=vmem, size = 0x18000, scoped, tag = 'input window, operand 1, single buffered']
    #allocation3 [shape = 's32[1]{0}', space=sflag, size = 0x4, scoped, tag = 'scoped memory for weather_lstm_forward.1']
    %8 = vsyncpa [#allocation3], 0
    // Predicated region
    $region2: #{weather_lstm_forward.1} parent=1 // pred_check
      _
    $region3: #{weather_lstm_forward.1} parent=1 // pred_check_branch
      %10 = sbr.rel (0) target = $region5
    $region4: #{weather_lstm_forward.1} parent=1 // pred_region
      _
    $region5: #{weather_lstm_forward.1} parent=1 // pred_fallthru
      _
    // Predicated region
    $region6: #{weather_lstm_forward.1} parent=1 // pred_check
      _
    $region7: #{weather_lstm_forward.1} parent=1 // pred_check_branch
      %12 = sbr.rel (0) target = $region9
    $region8: #{weather_lstm_forward.1} parent=1 // pred_region
      %s14 = ssub.s32 3072, 3072
      %15 = vsyncadd [#allocation3], %s14
      %s16 = sshll.u32 [#allocation2], 4
      %s17 = int_to_ptr.vmem [resolvable:$true] %s16
      %22 = dma.hbm_to_vmem [thread:$0]  %s1, 3072, %s17, [#allocation3], 128, 128, 8
    $region9: #{weather_lstm_forward.1} parent=1 // pred_fallthru
      _
    // Predicated region
    $region10: #{weather_lstm_forward.1} parent=1 // pred_check
      _
    $region11: #{weather_lstm_forward.1} parent=1 // pred_check_branch
      %24 = sbr.rel (0) target = $region13
    $region12: #{weather_lstm_forward.1} parent=1 // pred_region
      _
    $region13: #{weather_lstm_forward.1} parent=1 // pred_fallthru
      _
    // Predicated region
    $region14: #{weather_lstm_forward.1} parent=1 // pred_check
      _
    $region15: #{weather_lstm_forward.1} parent=1 // pred_check_branch
      %26 = sbr.rel (0) target = $region17
    $region16: #{weather_lstm_forward.1} parent=1 // pred_region
      %27 = dma.done [#allocation3], 3072
    $region17: #{weather_lstm_forward.1} parent=1 // pred_fallthru
      _
    %v29 = vld [vmem:[%s2] sm:$0xff]
    %v30 = vld [vmem:[%s2 + $0x8] sm:$0xff]
    %v31 = vlaneseq
    %v32 = vshrl.u32 %v31, 7
    %v33 = vsub.s32 2, %v32
    %v34 = vrot.slane %v29, %v33
    %v35 = vlaneseq
    %v36 = vshrl.u32 %v35, 7
    %v37 = vsub.s32 2, %v36
    %v38 = vrot.slane %v30, %v37
    %v39 = vld [vmem:[#allocation2] sm:$0xff]
    %v40 = vld [vmem:[#allocation2 + $0x8] sm:$0xff]
    %v41 = vld [vmem:[#allocation2 + $0x10] sm:$0xff]
    %v42 = vld [vmem:[#allocation2 + $0x18] sm:$0xff]
    %v43 = vld [vmem:[#allocation2 + $0x20] sm:$0xff]
    %v44 = vld [vmem:[#allocation2 + $0x28] sm:$0xff]
    %v45 = vld [vmem:[#allocation2 + $0x30] sm:$0xff]
    %v46 = vld [vmem:[#allocation2 + $0x38] sm:$0xff]
    %v47 = vld [vmem:[#allocation2 + $0x40] sm:$0xff]
    %v48 = vld [vmem:[#allocation2 + $0x48] sm:$0xff]
    %v49 = vld [vmem:[#allocation2 + $0x50] sm:$0xff]
    %v50 = vld [vmem:[#allocation2 + $0x58] sm:$0xff]
    %v51 = vld [vmem:[#allocation2 + $0x60] sm:$0xff]
    %v52 = vld [vmem:[#allocation2 + $0x68] sm:$0xff]
    %v53 = vld [vmem:[#allocation2 + $0x70] sm:$0xff]
    %v54 = vld [vmem:[#allocation2 + $0x78] sm:$0xff]
    %v55 = vld [vmem:[#allocation2 + $0x80] sm:$0xff]
    %v56 = vld [vmem:[#allocation2 + $0x88] sm:$0xff]
    %v57 = vld [vmem:[#allocation2 + $0x90] sm:$0xff]
    %v58 = vld [vmem:[#allocation2 + $0x98] sm:$0xff]
    %v59 = vld [vmem:[#allocation2 + $0xa0] sm:$0xff]
    %v60 = vld [vmem:[#allocation2 + $0xa8] sm:$0xff]
    %v61 = vld [vmem:[#allocation2 + $0xb0] sm:$0xff]
    %v62 = vld [vmem:[#allocation2 + $0xb8] sm:$0xff]
    %v63 = vld [vmem:[%s0] sm:$0xff]
    %v64 = vld [vmem:[%s0 + $0x8] sm:$0xff]
    %v65 = vld [vmem:[%s0 + $0x10] sm:$0xff]
    %v66 = vld [vmem:[%s0 + $0x18] sm:$0xff]
    %v67 = vld [vmem:[%s0 + $0x20] sm:$0xff]
    %v68 = vld [vmem:[%s0 + $0x28] sm:$0xff]
    %v69 = vld [vmem:[%s0 + $0x30] sm:$0xff]
    %v70 = vld [vmem:[%s0 + $0x38] sm:$0xff]
    %72 = vset.pattern.permute.xlu0 0
    %73 = vperm.xlu0 %72, %v63
    %v74 = vpop.permute.xlu0 %73
    %77 = vset.pattern.permute.xlu0 0
    %78 = vperm.xlu0 %77, %v64
    %v79 = vpop.permute.xlu0 %78
    %82 = vset.pattern.permute.xlu0 0
    %83 = vperm.xlu0 %82, %v65
    %v84 = vpop.permute.xlu0 %83
    %87 = vset.pattern.permute.xlu0 0
    %88 = vperm.xlu0 %87, %v66
    %v89 = vpop.permute.xlu0 %88
    %92 = vset.pattern.permute.xlu0 0
    %93 = vperm.xlu0 %92, %v67
    %v94 = vpop.permute.xlu0 %93
    %97 = vset.pattern.permute.xlu0 0
    %98 = vperm.xlu0 %97, %v68
    %v99 = vpop.permute.xlu0 %98
    %102 = vset.pattern.permute.xlu0 0
    %103 = vperm.xlu0 %102, %v69
    %v104 = vpop.permute.xlu0 %103
    %107 = vset.pattern.permute.xlu0 0
    %108 = vperm.xlu0 %107, %v70
    %v109 = vpop.permute.xlu0 %108
    %v111 = vlaneseq
    %v112 = vshrl.u32 %v111, 7
    %v113 = vsub.s32 0, %v112
    %v114 = vrot.slane %v29, %v113
    %v115 = vlaneseq
    %v116 = vshrl.u32 %v115, 7
    %v117 = vsub.s32 0, %v116
    %v118 = vrot.slane %v30, %v117
    %v119 = vmul.f32 %v74, %v114
    %v120 = vmul.f32 %v74, %v118
    %v121 = vmul.f32 %v79, %v114
    %v122 = vmul.f32 %v79, %v118
    %v123 = vmul.f32 %v84, %v114
    %v124 = vmul.f32 %v84, %v118
    %v125 = vmul.f32 %v89, %v114
    %v126 = vmul.f32 %v89, %v118
    %v127 = vmul.f32 %v94, %v114
    %v128 = vmul.f32 %v94, %v118
    %v129 = vmul.f32 %v99, %v114
    %v130 = vmul.f32 %v99, %v118
    %v131 = vmul.f32 %v104, %v114
    %v132 = vmul.f32 %v104, %v118
    %v133 = vmul.f32 %v109, %v114
    %v134 = vmul.f32 %v109, %v118
    %v135 = vlaneseq
    %v136 = vshrl.u32 %v135, 7
    %v137 = vsub.s32 1, %v136
    %v138 = vrot.slane %v29, %v137
    %v139 = vlaneseq
    %v140 = vshrl.u32 %v139, 7
    %v141 = vsub.s32 1, %v140
    %v142 = vrot.slane %v30, %v141
    %v143 = vadd.f32 %v119, %v138
    %v144 = vadd.f32 %v120, %v142
    %v145 = vadd.f32 %v121, %v138
    %v146 = vadd.f32 %v122, %v142
    %v147 = vadd.f32 %v123, %v138
    %v148 = vadd.f32 %v124, %v142
    %v149 = vadd.f32 %v125, %v138
    %v150 = vadd.f32 %v126, %v142
    %v151 = vadd.f32 %v127, %v138
    %v152 = vadd.f32 %v128, %v142
    %v153 = vadd.f32 %v129, %v138
    %v154 = vadd.f32 %v130, %v142
    %v155 = vadd.f32 %v131, %v138
    %v156 = vadd.f32 %v132, %v142
    %v157 = vadd.f32 %v133, %v138
    %v158 = vadd.f32 %v134, %v142
    %v167 = vunpack.c.l.b16 %v39
    %v168 = vunpack.c.h.b16 %v39
    %v169 = vunpack.c.l.b16 %v40
    %v170 = vunpack.c.h.b16 %v40
    %v171 = vunpack.c.l.b16 %v41
    %v172 = vunpack.c.h.b16 %v41
    %v173 = vunpack.c.l.b16 %v42
    %v174 = vunpack.c.h.b16 %v42
    %v175 = vunpack.c.l.b16 %v43
    %v176 = vunpack.c.h.b16 %v43
    %v177 = vunpack.c.l.b16 %v44
    %v178 = vunpack.c.h.b16 %v44
    %v179 = vunpack.c.l.b16 %v45
    %v180 = vunpack.c.h.b16 %v45
    %v181 = vunpack.c.l.b16 %v46
    %v182 = vunpack.c.h.b16 %v46
    %v183 = vpack.c.b16 %v169, %v167
    %v184 = vpack.c.b16 %v170, %v168
    %v185 = vpack.c.b16 %v173, %v171
    %v186 = vpack.c.b16 %v174, %v172
    %v187 = vpack.c.b16 %v177, %v175
    %v188 = vpack.c.b16 %v178, %v176
    %v189 = vpack.c.b16 %v181, %v179
    %v190 = vpack.c.b16 %v182, %v180
    %vm199 = vcmask 523264
    %v201 = vsel %vm199, 0, 0
    %203 = vmatprep.subr.bf16.mxu0 %v184
    %204 = vmatpush1.bf16.msra.mxu0 %v183
    %205 = vmatprep.subr.bf16.mxu0 %v186
    %206 = vmatpush1.bf16.msra.mxu0 %v185
    %207 = vmatprep.subr.bf16.mxu0 %v188
    %208 = vmatpush1.bf16.msra.mxu0 %v187
    %209 = vmatprep.subr.bf16.mxu0 %v190
    %210 = vmatpush1.bf16.msra.mxu0 %v189
    %211 = vmatprep.subr.bf16.mxu0 0
    %212 = vmatpush1.bf16.msra.mxu0 0
    %213 = vmatprep.subr.bf16.mxu0 0
    %214 = vmatpush1.bf16.msra.mxu0 0
    %215 = vmatprep.subr.bf16.mxu0 0
    %216 = vmatpush1.bf16.msra.mxu0 0
    %217 = vmatprep.subr.bf16.mxu0 0
    %218 = vmatpush1.bf16.msra.mxu0 0
    %219 = vmatprep.subr.bf16.mxu0 0
    %220 = vmatpush1.bf16.msra.mxu0 0
    %221 = vmatprep.subr.bf16.mxu0 0
    %222 = vmatpush1.bf16.msra.mxu0 0
    %223 = vmatprep.subr.bf16.mxu0 0
    %224 = vmatpush1.bf16.msra.mxu0 0
    %225 = vmatprep.subr.bf16.mxu0 0
    %226 = vmatpush1.bf16.msra.mxu0 0
    %227 = vmatprep.subr.bf16.mxu0 0
    %228 = vmatpush1.bf16.msra.mxu0 0
    %229 = vmatprep.subr.bf16.mxu0 0
    %230 = vmatpush1.bf16.msra.mxu0 0
    %231 = vmatprep.subr.bf16.mxu0 0
    %232 = vmatpush1.bf16.msra.mxu0 0
    %233 = vmatprep.subr.bf16.mxu0 0
    %234 = vmatpush1.bf16.msra.mxu0 0
    %235 = vmatprep.mubr.bf16.mxu0 0
    %236 = vmatmul.mubr.bf16.gmra.mrb[0].mxu0 %v201
    %v237 = vpop.f32.mrb[0].mxu0
    %v238 = vadd.f32 0.0, %v237
    %v239 = vpop.f32.mrb[0].mxu0
    %v240 = vadd.f32 0.0, %v239
    %v241 = vpop.f32.mrb[0].mxu0
    %v242 = vpop.f32.mrb[0].mxu0
    %243 = vdwg.mxu0
    %v244 = vadd.f32 %v143, %v238
    %v245 = vadd.f32 %v144, %v240
    %v246 = vxor.u32 %v244, 2147483648
    %v247 = vxor.u32 %v245, 2147483648
    %v248 = vmul.f32 %v246, 1.442695
    %v249 = vpow.pop %v248
    %v250 = vmul.f32 %v247, 1.442695
    %v251 = vpow.pop %v250
    %v252 = vadd.f32 %v249, 1.0
    %v253 = vadd.f32 %v251, 1.0
    %v254 = vrcp.pop %v252
    %v255 = vmul.f32 1.0, %v254
    %v256 = vrcp.pop %v253
    %v257 = vmul.f32 1.0, %v256
    %v258 = vtanh.pop %v245
    %v259 = vmul.f32 %v255, 0.0
    %261 = vrot.lane.b32.xlu0 %v258, 64
    %v262 = vpop.permute.xlu0 %261
    %v264 = vmul.f32 %v255, %v262
    %266 = vrot.lane.b32.xlu0 %v264, 64
    %v267 = vpop.permute.xlu0 %266
    %v269 = vadd.f32 %v259, %v267
    %v270 = vtanh.pop %v269
    %272 = vrot.lane.b32.xlu0 %v270, 64
    %v273 = vpop.permute.xlu0 %272
    %v275 = vmul.f32 %v257, %v273
    %v276 = vpack.c.bf16 %v275, %v275
    %v285 = vunpack.c.l.b16 %v55
    %v286 = vunpack.c.h.b16 %v55
    %v287 = vunpack.c.l.b16 %v56
    %v288 = vunpack.c.h.b16 %v56
    %v289 = vunpack.c.l.b16 %v57
    %v290 = vunpack.c.h.b16 %v57
    %v291 = vunpack.c.l.b16 %v58
    %v292 = vunpack.c.h.b16 %v58
    %v293 = vunpack.c.l.b16 %v59
    %v294 = vunpack.c.h.b16 %v59
    %v295 = vunpack.c.l.b16 %v60
    %v296 = vunpack.c.h.b16 %v60
    %v297 = vunpack.c.l.b16 %v61
    %v298 = vunpack.c.h.b16 %v61
    %v299 = vunpack.c.l.b16 %v62
    %v300 = vunpack.c.h.b16 %v62
    %v301 = vpack.c.b16 %v287, %v285
    %v302 = vpack.c.b16 %v288, %v286
    %v303 = vpack.c.b16 %v291, %v289
    %v304 = vpack.c.b16 %v292, %v290
    %v305 = vpack.c.b16 %v295, %v293
    %v306 = vpack.c.b16 %v296, %v294
    %v307 = vpack.c.b16 %v299, %v297
    %v308 = vpack.c.b16 %v300, %v298
    %317 = vmatprep.subr.bf16.mxu0 %v302
    %318 = vmatpush1.bf16.msra.mxu0 %v301
    %319 = vmatprep.subr.bf16.mxu0 %v304
    %320 = vmatpush1.bf16.msra.mxu0 %v303
    %321 = vmatprep.subr.bf16.mxu0 %v306
    %322 = vmatpush1.bf16.msra.mxu0 %v305
    %323 = vmatprep.subr.bf16.mxu0 %v308
    %324 = vmatpush1.bf16.msra.mxu0 %v307
    %325 = vmatprep.subr.bf16.mxu0 0
    %326 = vmatpush1.bf16.msra.mxu0 0
    %327 = vmatprep.subr.bf16.mxu0 0
    %328 = vmatpush1.bf16.msra.mxu0 0
    %329 = vmatprep.subr.bf16.mxu0 0
    %330 = vmatpush1.bf16.msra.mxu0 0
    %331 = vmatprep.subr.bf16.mxu0 0
    %332 = vmatpush1.bf16.msra.mxu0 0
    %333 = vmatprep.subr.bf16.mxu0 0
    %334 = vmatpush1.bf16.msra.mxu0 0
    %335 = vmatprep.subr.bf16.mxu0 0
    %336 = vmatpush1.bf16.msra.mxu0 0
    %337 = vmatprep.subr.bf16.mxu0 0
    %338 = vmatpush1.bf16.msra.mxu0 0
    %339 = vmatprep.subr.bf16.mxu0 0
    %340 = vmatpush1.bf16.msra.mxu0 0
    %341 = vmatprep.subr.bf16.mxu0 0
    %342 = vmatpush1.bf16.msra.mxu0 0
    %343 = vmatprep.subr.bf16.mxu0 0
    %344 = vmatpush1.bf16.msra.mxu0 0
    %345 = vmatprep.subr.bf16.mxu0 0
    %346 = vmatpush1.bf16.msra.mxu0 0
    %347 = vmatprep.subr.bf16.mxu0 0
    %348 = vmatpush1.bf16.msra.mxu0 0
    %349 = vmatprep.mubr.bf16.mxu0 0
    %350 = vmatmul.mubr.bf16.gmra.mrb[0].mxu0 %v201
    %v351 = vpop.f32.mrb[0].mxu0
    %v352 = vadd.f32 0.0, %v351
    %v353 = vpop.f32.mrb[0].mxu0
    %v354 = vadd.f32 0.0, %v353
    %v355 = vpop.f32.mrb[0].mxu0
    %v356 = vpop.f32.mrb[0].mxu0
    %357 = vdwg.mxu0
    %v366 = vunpack.c.l.b16 %v47
    %v367 = vunpack.c.h.b16 %v47
    %v368 = vunpack.c.l.b16 %v48
    %v369 = vunpack.c.h.b16 %v48
    %v370 = vunpack.c.l.b16 %v49
    %v371 = vunpack.c.h.b16 %v49
    %v372 = vunpack.c.l.b16 %v50
    %v373 = vunpack.c.h.b16 %v50
    %v374 = vunpack.c.l.b16 %v51
    %v375 = vunpack.c.h.b16 %v51
    %v376 = vunpack.c.l.b16 %v52
    %v377 = vunpack.c.h.b16 %v52
    %v378 = vunpack.c.l.b16 %v53
    %v379 = vunpack.c.h.b16 %v53
    %v380 = vunpack.c.l.b16 %v54
    %v381 = vunpack.c.h.b16 %v54
    %v382 = vpack.c.b16 %v368, %v366
    %v383 = vpack.c.b16 %v369, %v367
    %v384 = vpack.c.b16 %v372, %v370
    %v385 = vpack.c.b16 %v373, %v371
    %v386 = vpack.c.b16 %v376, %v374
    %v387 = vpack.c.b16 %v377, %v375
    %v388 = vpack.c.b16 %v380, %v378
    %v389 = vpack.c.b16 %v381, %v379
    %v399 = vsel %vm199, %v276, 0
    %401 = vmatprep.subr.bf16.mxu0 %v383
    %402 = vmatpush1.bf16.msra.mxu0 %v382
    %403 = vmatprep.subr.bf16.mxu0 %v385
    %404 = vmatpush1.bf16.msra.mxu0 %v384
    %405 = vmatprep.subr.bf16.mxu0 %v387
    %406 = vmatpush1.bf16.msra.mxu0 %v386
    %407 = vmatprep.subr.bf16.mxu0 %v389
    %408 = vmatpush1.bf16.msra.mxu0 %v388
    %409 = vmatprep.subr.bf16.mxu0 0
    %410 = vmatpush1.bf16.msra.mxu0 0
    %411 = vmatprep.subr.bf16.mxu0 0
    %412 = vmatpush1.bf16.msra.mxu0 0
    %413 = vmatprep.subr.bf16.mxu0 0
    %414 = vmatpush1.bf16.msra.mxu0 0
    %415 = vmatprep.subr.bf16.mxu0 0
    %416 = vmatpush1.bf16.msra.mxu0 0
    %417 = vmatprep.subr.bf16.mxu0 0
    %418 = vmatpush1.bf16.msra.mxu0 0
    %419 = vmatprep.subr.bf16.mxu0 0
    %420 = vmatpush1.bf16.msra.mxu0 0
    %421 = vmatprep.subr.bf16.mxu0 0
    %422 = vmatpush1.bf16.msra.mxu0 0
    %423 = vmatprep.subr.bf16.mxu0 0
    %424 = vmatpush1.bf16.msra.mxu0 0
    %425 = vmatprep.subr.bf16.mxu0 0
    %426 = vmatpush1.bf16.msra.mxu0 0
    %427 = vmatprep.subr.bf16.mxu0 0
    %428 = vmatpush1.bf16.msra.mxu0 0
    %429 = vmatprep.subr.bf16.mxu0 0
    %430 = vmatpush1.bf16.msra.mxu0 0
    %431 = vmatprep.subr.bf16.mxu0 0
    %432 = vmatpush1.bf16.msra.mxu0 0
    %433 = vmatprep.mubr.bf16.mxu0 0
    %434 = vmatmul.mubr.bf16.gmra.mrb[0].mxu0 %v399
    %v435 = vpop.f32.mrb[0].mxu0
    %v436 = vadd.f32 %v352, %v435
    %v437 = vpop.f32.mrb[0].mxu0
    %v438 = vadd.f32 %v354, %v437
    %v439 = vpop.f32.mrb[0].mxu0
    %v440 = vpop.f32.mrb[0].mxu0
    %441 = vdwg.mxu0
    %v442 = vadd.f32 %v436, %v34
    %v443 = vadd.f32 %v438, %v38
    %v444 = vxor.u32 %v442, 2147483648
    %v445 = vxor.u32 %v443, 2147483648
    %v446 = vmul.f32 %v444, 1.442695
    %v447 = vpow.pop %v446
    %v448 = vmul.f32 %v445, 1.442695
    %v449 = vpow.pop %v448
    %v450 = vadd.f32 %v447, 1.0
    %v451 = vadd.f32 %v449, 1.0
    %v452 = vrcp.pop %v450
    %v453 = vmul.f32 1.0, %v452
    %v454 = vrcp.pop %v451
    %v455 = vmul.f32 1.0, %v454
    %v456 = vtanh.pop %v443
    %v457 = vmul.f32 %v453, 0.0
    %459 = vrot.lane.b32.xlu0 %v456, 64
    %v460 = vpop.permute.xlu0 %459
    %v462 = vmul.f32 %v453, %v460
    %464 = vrot.lane.b32.xlu0 %v462, 64
    %v465 = vpop.permute.xlu0 %464
    %v467 = vadd.f32 %v457, %v465
    %v468 = vtanh.pop %v467
    %470 = vrot.lane.b32.xlu0 %v468, 64
    %v471 = vpop.permute.xlu0 %470
    %v473 = vmul.f32 %v455, %v471
    %474 = vmatprep.subr.bf16.mxu0 %v184
    %475 = vmatpush1.bf16.msra.mxu0 %v183
    %476 = vmatprep.subr.bf16.mxu0 %v186
    %477 = vmatpush1.bf16.msra.mxu0 %v185
    %478 = vmatprep.subr.bf16.mxu0 %v188
    %479 = vmatpush1.bf16.msra.mxu0 %v187
    %480 = vmatprep.subr.bf16.mxu0 %v190
    %481 = vmatpush1.bf16.msra.mxu0 %v189
    %482 = vmatprep.subr.bf16.mxu0 0
    %483 = vmatpush1.bf16.msra.mxu0 0
    %484 = vmatprep.subr.bf16.mxu0 0
    %485 = vmatpush1.bf16.msra.mxu0 0
    %486 = vmatprep.subr.bf16.mxu0 0
    %487 = vmatpush1.bf16.msra.mxu0 0
    %488 = vmatprep.subr.bf16.mxu0 0
    %489 = vmatpush1.bf16.msra.mxu0 0
    %490 = vmatprep.subr.bf16.mxu0 0
    %491 = vmatpush1.bf16.msra.mxu0 0
    %492 = vmatprep.subr.bf16.mxu0 0
    %493 = vmatpush1.bf16.msra.mxu0 0
    %494 = vmatprep.subr.bf16.mxu0 0
    %495 = vmatpush1.bf16.msra.mxu0 0
    %496 = vmatprep.subr.bf16.mxu0 0
    %497 = vmatpush1.bf16.msra.mxu0 0
    %498 = vmatprep.subr.bf16.mxu0 0
    %499 = vmatpush1.bf16.msra.mxu0 0
    %500 = vmatprep.subr.bf16.mxu0 0
    %501 = vmatpush1.bf16.msra.mxu0 0
    %502 = vmatprep.subr.bf16.mxu0 0
    %503 = vmatpush1.bf16.msra.mxu0 0
    %504 = vmatprep.subr.bf16.mxu0 0
    %505 = vmatpush1.bf16.msra.mxu0 0
    %506 = vmatprep.mubr.bf16.mxu0 0
    %507 = vmatmul.mubr.bf16.gmra.mrb[0].mxu0 %v399
    %v508 = vpop.f32.mrb[0].mxu0
    %v509 = vadd.f32 0.0, %v508
    %v510 = vpop.f32.mrb[0].mxu0
    %v511 = vadd.f32 0.0, %v510
    %v512 = vpop.f32.mrb[0].mxu0
    %v513 = vpop.f32.mrb[0].mxu0
    %514 = vdwg.mxu0
    %v515 = vadd.f32 %v145, %v509
    %v516 = vadd.f32 %v146, %v511
    %v517 = vxor.u32 %v515, 2147483648
    %v518 = vxor.u32 %v516, 2147483648
    %v519 = vmul.f32 %v517, 1.442695
    %v520 = vpow.pop %v519
    %v521 = vmul.f32 %v518, 1.442695
    %v522 = vpow.pop %v521
    %v523 = vadd.f32 %v520, 1.0
    %v524 = vadd.f32 %v522, 1.0
    %v525 = vrcp.pop %v523
    %v526 = vmul.f32 1.0, %v525
    %v527 = vrcp.pop %v524
    %v528 = vmul.f32 1.0, %v527
    %v529 = vtanh.pop %v516
    %v530 = vmul.f32 %v526, %v269
    %532 = vrot.lane.b32.xlu0 %v529, 64
    %v533 = vpop.permute.xlu0 %532
    %v535 = vmul.f32 %v526, %v533
    %537 = vrot.lane.b32.xlu0 %v535, 64
    %v538 = vpop.permute.xlu0 %537
    %v540 = vadd.f32 %v530, %v538
    %v541 = vtanh.pop %v540
    %543 = vrot.lane.b32.xlu0 %v541, 64
    %v544 = vpop.permute.xlu0 %543
    %v546 = vmul.f32 %v528, %v544
    %v547 = vpack.c.bf16 %v546, %v546
    %v548 = vpack.c.bf16 %v473, %v473
    %v550 = vsel %vm199, %v548, 0
    %552 = vmatprep.subr.bf16.mxu0 %v302
    %553 = vmatpush1.bf16.msra.mxu0 %v301
    %554 = vmatprep.subr.bf16.mxu0 %v304
    %555 = vmatpush1.bf16.msra.mxu0 %v303
    %556 = vmatprep.subr.bf16.mxu0 %v306
    %557 = vmatpush1.bf16.msra.mxu0 %v305
    %558 = vmatprep.subr.bf16.mxu0 %v308
    %559 = vmatpush1.bf16.msra.mxu0 %v307
    %560 = vmatprep.subr.bf16.mxu0 0
    %561 = vmatpush1.bf16.msra.mxu0 0
    %562 = vmatprep.subr.bf16.mxu0 0
    %563 = vmatpush1.bf16.msra.mxu0 0
    %564 = vmatprep.subr.bf16.mxu0 0
    %565 = vmatpush1.bf16.msra.mxu0 0
    %566 = vmatprep.subr.bf16.mxu0 0
    %567 = vmatpush1.bf16.msra.mxu0 0
    %568 = vmatprep.subr.bf16.mxu0 0
    %569 = vmatpush1.bf16.msra.mxu0 0
    %570 = vmatprep.subr.bf16.mxu0 0
    %571 = vmatpush1.bf16.msra.mxu0 0
    %572 = vmatprep.subr.bf16.mxu0 0
    %573 = vmatpush1.bf16.msra.mxu0 0
    %574 = vmatprep.subr.bf16.mxu0 0
    %575 = vmatpush1.bf16.msra.mxu0 0
    %576 = vmatprep.subr.bf16.mxu0 0
    %577 = vmatpush1.bf16.msra.mxu0 0
    %578 = vmatprep.subr.bf16.mxu0 0
    %579 = vmatpush1.bf16.msra.mxu0 0
    %580 = vmatprep.subr.bf16.mxu0 0
    %581 = vmatpush1.bf16.msra.mxu0 0
    %582 = vmatprep.subr.bf16.mxu0 0
    %583 = vmatpush1.bf16.msra.mxu0 0
    %584 = vmatprep.mubr.bf16.mxu0 0
    %585 = vmatmul.mubr.bf16.gmra.mrb[0].mxu0 %v550
    %v586 = vpop.f32.mrb[0].mxu0
    %v587 = vadd.f32 0.0, %v586
    %v588 = vpop.f32.mrb[0].mxu0
    %v589 = vadd.f32 0.0, %v588
    %v590 = vpop.f32.mrb[0].mxu0
    %v591 = vpop.f32.mrb[0].mxu0
    %592 = vdwg.mxu0
    %v594 = vsel %vm199, %v547, 0
    %596 = vmatprep.subr.bf16.mxu0 %v383
    %597 = vmatpush1.bf16.msra.mxu0 %v382
    %598 = vmatprep.subr.bf16.mxu0 %v385
    %599 = vmatpush1.bf16.msra.mxu0 %v384
    %600 = vmatprep.subr.bf16.mxu0 %v387
    %601 = vmatpush1.bf16.msra.mxu0 %v386
    %602 = vmatprep.subr.bf16.mxu0 %v389
    %603 = vmatpush1.bf16.msra.mxu0 %v388
    %604 = vmatprep.subr.bf16.mxu0 0
    %605 = vmatpush1.bf16.msra.mxu0 0
    %606 = vmatprep.subr.bf16.mxu0 0
    %607 = vmatpush1.bf16.msra.mxu0 0
    %608 = vmatprep.subr.bf16.mxu0 0
    %609 = vmatpush1.bf16.msra.mxu0 0
    %610 = vmatprep.subr.bf16.mxu0 0
    %611 = vmatpush1.bf16.msra.mxu0 0
    %612 = vmatprep.subr.bf16.mxu0 0
    %613 = vmatpush1.bf16.msra.mxu0 0
    %614 = vmatprep.subr.bf16.mxu0 0
    %615 = vmatpush1.bf16.msra.mxu0 0
    %616 = vmatprep.subr.bf16.mxu0 0
    %617 = vmatpush1.bf16.msra.mxu0 0
    %618 = vmatprep.subr.bf16.mxu0 0
    %619 = vmatpush1.bf16.msra.mxu0 0
    %620 = vmatprep.subr.bf16.mxu0 0
    %621 = vmatpush1.bf16.msra.mxu0 0
    %622 = vmatprep.subr.bf16.mxu0 0
    %623 = vmatpush1.bf16.msra.mxu0 0
    %624 = vmatprep.subr.bf16.mxu0 0
    %625 = vmatpush1.bf16.msra.mxu0 0
    %626 = vmatprep.subr.bf16.mxu0 0
    %627 = vmatpush1.bf16.msra.mxu0 0
    %628 = vmatprep.mubr.bf16.mxu0 0
    %629 = vmatmul.mubr.bf16.gmra.mrb[0].mxu0 %v594
    %v630 = vpop.f32.mrb[0].mxu0
    %v631 = vadd.f32 %v587, %v630
    %v632 = vpop.f32.mrb[0].mxu0
    %v633 = vadd.f32 %v589, %v632
    %v634 = vpop.f32.mrb[0].mxu0
    %v635 = vpop.f32.mrb[0].mxu0
    %636 = vdwg.mxu0
    %v637 = vadd.f32 %v631, %v34
    %v638 = vadd.f32 %v633, %v38
    %v639 = vxor.u32 %v637, 2147483648
    %v640 = vxor.u32 %v638, 2147483648
    %v641 = vmul.f32 %v639, 1.442695
    %v642 = vpow.pop %v641
    %v643 = vmul.f32 %v640, 1.442695
    %v644 = vpow.pop %v643
    %v645 = vadd.f32 %v642, 1.0
    %v646 = vadd.f32 %v644, 1.0
    %v647 = vrcp.pop %v645
    %v648 = vmul.f32 1.0, %v647
    %v649 = vrcp.pop %v646
    %v650 = vmul.f32 1.0, %v649
    %v651 = vtanh.pop %v638
    %v652 = vmul.f32 %v648, %v467
    %654 = vrot.lane.b32.xlu0 %v651, 64
    %v655 = vpop.permute.xlu0 %654
    %v657 = vmul.f32 %v648, %v655
    %659 = vrot.lane.b32.xlu0 %v657, 64
    %v660 = vpop.permute.xlu0 %659
    %v662 = vadd.f32 %v652, %v660
    %v663 = vtanh.pop %v662
    %665 = vrot.lane.b32.xlu0 %v663, 64
    %v666 = vpop.permute.xlu0 %665
    %v668 = vmul.f32 %v650, %v666
    %669 = vmatprep.subr.bf16.mxu0 %v184
    %670 = vmatpush1.bf16.msra.mxu0 %v183
    %671 = vmatprep.subr.bf16.mxu0 %v186
    %672 = vmatpush1.bf16.msra.mxu0 %v185
    %673 = vmatprep.subr.bf16.mxu0 %v188
    %674 = vmatpush1.bf16.msra.mxu0 %v187
    %675 = vmatprep.subr.bf16.mxu0 %v190
    %676 = vmatpush1.bf16.msra.mxu0 %v189
    %677 = vmatprep.subr.bf16.mxu0 0
    %678 = vmatpush1.bf16.msra.mxu0 0
    %679 = vmatprep.subr.bf16.mxu0 0
    %680 = vmatpush1.bf16.msra.mxu0 0
    %681 = vmatprep.subr.bf16.mxu0 0
    %682 = vmatpush1.bf16.msra.mxu0 0
    %683 = vmatprep.subr.bf16.mxu0 0
    %684 = vmatpush1.bf16.msra.mxu0 0
    %685 = vmatprep.subr.bf16.mxu0 0
    %686 = vmatpush1.bf16.msra.mxu0 0
    %687 = vmatprep.subr.bf16.mxu0 0
    %688 = vmatpush1.bf16.msra.mxu0 0
    %689 = vmatprep.subr.bf16.mxu0 0
    %690 = vmatpush1.bf16.msra.mxu0 0
    %691 = vmatprep.subr.bf16.mxu0 0
    %692 = vmatpush1.bf16.msra.mxu0 0
    %693 = vmatprep.subr.bf16.mxu0 0
    %694 = vmatpush1.bf16.msra.mxu0 0
    %695 = vmatprep.subr.bf16.mxu0 0
    %696 = vmatpush1.bf16.msra.mxu0 0
    %697 = vmatprep.subr.bf16.mxu0 0
    %698 = vmatpush1.bf16.msra.mxu0 0
    %699 = vmatprep.subr.bf16.mxu0 0
    %700 = vmatpush1.bf16.msra.mxu0 0
    %701 = vmatprep.mubr.bf16.mxu0 0
    %702 = vmatmul.mubr.bf16.gmra.mrb[0].mxu0 %v594
    %v703 = vpop.f32.mrb[0].mxu0
    %v704 = vadd.f32 0.0, %v703
    %v705 = vpop.f32.mrb[0].mxu0
    %v706 = vadd.f32 0.0, %v705
    %v707 = vpop.f32.mrb[0].mxu0
    %v708 = vpop.f32.mrb[0].mxu0
    %709 = vdwg.mxu0
    %v710 = vadd.f32 %v147, %v704
    %v711 = vadd.f32 %v148, %v706
    %v712 = vxor.u32 %v710, 2147483648
    %v713 = vxor.u32 %v711, 2147483648
    %v714 = vmul.f32 %v712, 1.442695
    %v715 = vpow.pop %v714
    %v716 = vmul.f32 %v713, 1.442695
    %v717 = vpow.pop %v716
    %v718 = vadd.f32 %v715, 1.0
    %v719 = vadd.f32 %v717, 1.0
    %v720 = vrcp.pop %v718
    %v721 = vmul.f32 1.0, %v720
    %v722 = vrcp.pop %v719
    %v723 = vmul.f32 1.0, %v722
    %v724 = vtanh.pop %v711
    %v725 = vmul.f32 %v721, %v540
    %727 = vrot.lane.b32.xlu0 %v724, 64
    %v728 = vpop.permute.xlu0 %727
    %v730 = vmul.f32 %v721, %v728
    %732 = vrot.lane.b32.xlu0 %v730, 64
    %v733 = vpop.permute.xlu0 %732
    %v735 = vadd.f32 %v725, %v733
    %v736 = vtanh.pop %v735
    %738 = vrot.lane.b32.xlu0 %v736, 64
    %v739 = vpop.permute.xlu0 %738
    %v741 = vmul.f32 %v723, %v739
    %v742 = vpack.c.bf16 %v741, %v741
    %v743 = vpack.c.bf16 %v668, %v668
    %v745 = vsel %vm199, %v743, 0
    %747 = vmatprep.subr.bf16.mxu0 %v302
    %748 = vmatpush1.bf16.msra.mxu0 %v301
    %749 = vmatprep.subr.bf16.mxu0 %v304
    %750 = vmatpush1.bf16.msra.mxu0 %v303
    %751 = vmatprep.subr.bf16.mxu0 %v306
    %752 = vmatpush1.bf16.msra.mxu0 %v305
    %753 = vmatprep.subr.bf16.mxu0 %v308
    %754 = vmatpush1.bf16.msra.mxu0 %v307
    %755 = vmatprep.subr.bf16.mxu0 0
    %756 = vmatpush1.bf16.msra.mxu0 0
    %757 = vmatprep.subr.bf16.mxu0 0
    %758 = vmatpush1.bf16.msra.mxu0 0
    %759 = vmatprep.subr.bf16.mxu0 0
    %760 = vmatpush1.bf16.msra.mxu0 0
    %761 = vmatprep.subr.bf16.mxu0 0
    %762 = vmatpush1.bf16.msra.mxu0 0
    %763 = vmatprep.subr.bf16.mxu0 0
    %764 = vmatpush1.bf16.msra.mxu0 0
    %765 = vmatprep.subr.bf16.mxu0 0
    %766 = vmatpush1.bf16.msra.mxu0 0
    %767 = vmatprep.subr.bf16.mxu0 0
    %768 = vmatpush1.bf16.msra.mxu0 0
    %769 = vmatprep.subr.bf16.mxu0 0
    %770 = vmatpush1.bf16.msra.mxu0 0
    %771 = vmatprep.subr.bf16.mxu0 0
    %772 = vmatpush1.bf16.msra.mxu0 0
    %773 = vmatprep.subr.bf16.mxu0 0
    %774 = vmatpush1.bf16.msra.mxu0 0
    %775 = vmatprep.subr.bf16.mxu0 0
    %776 = vmatpush1.bf16.msra.mxu0 0
    %777 = vmatprep.subr.bf16.mxu0 0
    %778 = vmatpush1.bf16.msra.mxu0 0
    %779 = vmatprep.mubr.bf16.mxu0 0
    %780 = vmatmul.mubr.bf16.gmra.mrb[0].mxu0 %v745
    %v781 = vpop.f32.mrb[0].mxu0
    %v782 = vadd.f32 0.0, %v781
    %v783 = vpop.f32.mrb[0].mxu0
    %v784 = vadd.f32 0.0, %v783
    %v785 = vpop.f32.mrb[0].mxu0
    %v786 = vpop.f32.mrb[0].mxu0
    %787 = vdwg.mxu0
    %v789 = vsel %vm199, %v742, 0
    %791 = vmatprep.subr.bf16.mxu0 %v383
    %792 = vmatpush1.bf16.msra.mxu0 %v382
    %793 = vmatprep.subr.bf16.mxu0 %v385
    %794 = vmatpush1.bf16.msra.mxu0 %v384
    %795 = vmatprep.subr.bf16.mxu0 %v387
    %796 = vmatpush1.bf16.msra.mxu0 %v386
    %797 = vmatprep.subr.bf16.mxu0 %v389
    %798 = vmatpush1.bf16.msra.mxu0 %v388
    %799 = vmatprep.subr.bf16.mxu0 0
    %800 = vmatpush1.bf16.msra.mxu0 0
    %801 = vmatprep.subr.bf16.mxu0 0
    %802 = vmatpush1.bf16.msra.mxu0 0
    %803 = vmatprep.subr.bf16.mxu0 0
    %804 = vmatpush1.bf16.msra.mxu0 0
    %805 = vmatprep.subr.bf16.mxu0 0
    %806 = vmatpush1.bf16.msra.mxu0 0
    %807 = vmatprep.subr.bf16.mxu0 0
    %808 = vmatpush1.bf16.msra.mxu0 0
    %809 = vmatprep.subr.bf16.mxu0 0
    %810 = vmatpush1.bf16.msra.mxu0 0
    %811 = vmatprep.subr.bf16.mxu0 0
    %812 = vmatpush1.bf16.msra.mxu0 0
    %813 = vmatprep.subr.bf16.mxu0 0
    %814 = vmatpush1.bf16.msra.mxu0 0
    %815 = vmatprep.subr.bf16.mxu0 0
    %816 = vmatpush1.bf16.msra.mxu0 0
    %817 = vmatprep.subr.bf16.mxu0 0
    %818 = vmatpush1.bf16.msra.mxu0 0
    %819 = vmatprep.subr.bf16.mxu0 0
    %820 = vmatpush1.bf16.msra.mxu0 0
    %821 = vmatprep.subr.bf16.mxu0 0
    %822 = vmatpush1.bf16.msra.mxu0 0
    %823 = vmatprep.mubr.bf16.mxu0 0
    %824 = vmatmul.mubr.bf16.gmra.mrb[0].mxu0 %v789
    %v825 = vpop.f32.mrb[0].mxu0
    %v826 = vadd.f32 %v782, %v825
    %v827 = vpop.f32.mrb[0].mxu0
    %v828 = vadd.f32 %v784, %v827
    %v829 = vpop.f32.mrb[0].mxu0
    %v830 = vpop.f32.mrb[0].mxu0
    %831 = vdwg.mxu0
    %v832 = vadd.f32 %v826, %v34
    %v833 = vadd.f32 %v828, %v38
    %v834 = vxor.u32 %v832, 2147483648
    %v835 = vxor.u32 %v833, 2147483648
    %v836 = vmul.f32 %v834, 1.442695
    %v837 = vpow.pop %v836
    %v838 = vmul.f32 %v835, 1.442695
    %v839 = vpow.pop %v838
    %v840 = vadd.f32 %v837, 1.0
    %v841 = vadd.f32 %v839, 1.0
    %v842 = vrcp.pop %v840
    %v843 = vmul.f32 1.0, %v842
    %v844 = vrcp.pop %v841
    %v845 = vmul.f32 1.0, %v844
    %v846 = vtanh.pop %v833
    %v847 = vmul.f32 %v843, %v662
    %849 = vrot.lane.b32.xlu0 %v846, 64
    %v850 = vpop.permute.xlu0 %849
    %v852 = vmul.f32 %v843, %v850
    %854 = vrot.lane.b32.xlu0 %v852, 64
    %v855 = vpop.permute.xlu0 %854
    %v857 = vadd.f32 %v847, %v855
    %v858 = vtanh.pop %v857
    %860 = vrot.lane.b32.xlu0 %v858, 64
    %v861 = vpop.permute.xlu0 %860
    %v863 = vmul.f32 %v845, %v861
    %864 = vmatprep.subr.bf16.mxu0 %v184
    %865 = vmatpush1.bf16.msra.mxu0 %v183
    %866 = vmatprep.subr.bf16.mxu0 %v186
    %867 = vmatpush1.bf16.msra.mxu0 %v185
    %868 = vmatprep.subr.bf16.mxu0 %v188
    %869 = vmatpush1.bf16.msra.mxu0 %v187
    %870 = vmatprep.subr.bf16.mxu0 %v190
    %871 = vmatpush1.bf16.msra.mxu0 %v189
    %872 = vmatprep.subr.bf16.mxu0 0
    %873 = vmatpush1.bf16.msra.mxu0 0
    %874 = vmatprep.subr.bf16.mxu0 0
    %875 = vmatpush1.bf16.msra.mxu0 0
    %876 = vmatprep.subr.bf16.mxu0 0
    %877 = vmatpush1.bf16.msra.mxu0 0
    %878 = vmatprep.subr.bf16.mxu0 0
    %879 = vmatpush1.bf16.msra.mxu0 0
    %880 = vmatprep.subr.bf16.mxu0 0
    %881 = vmatpush1.bf16.msra.mxu0 0
    %882 = vmatprep.subr.bf16.mxu0 0
    %883 = vmatpush1.bf16.msra.mxu0 0
    %884 = vmatprep.subr.bf16.mxu0 0
    %885 = vmatpush1.bf16.msra.mxu0 0
    %886 = vmatprep.subr.bf16.mxu0 0
    %887 = vmatpush1.bf16.msra.mxu0 0
    %888 = vmatprep.subr.bf16.mxu0 0
    %889 = vmatpush1.bf16.msra.mxu0 0
    %890 = vmatprep.subr.bf16.mxu0 0
    %891 = vmatpush1.bf16.msra.mxu0 0
    %892 = vmatprep.subr.bf16.mxu0 0
    %893 = vmatpush1.bf16.msra.mxu0 0
    %894 = vmatprep.subr.bf16.mxu0 0
    %895 = vmatpush1.bf16.msra.mxu0 0
    %896 = vmatprep.mubr.bf16.mxu0 0
    %897 = vmatmul.mubr.bf16.gmra.mrb[0].mxu0 %v789
    %v898 = vpop.f32.mrb[0].mxu0
    %v899 = vadd.f32 0.0, %v898
    %v900 = vpop.f32.mrb[0].mxu0
    %v901 = vadd.f32 0.0, %v900
    %v902 = vpop.f32.mrb[0].mxu0
    %v903 = vpop.f32.mrb[0].mxu0
    %904 = vdwg.mxu0
    %v905 = vadd.f32 %v149, %v899
    %v906 = vadd.f32 %v150, %v901
    %v907 = vxor.u32 %v905, 2147483648
    %v908 = vxor.u32 %v906, 2147483648
    %v909 = vmul.f32 %v907, 1.442695
    %v910 = vpow.pop %v909
    %v911 = vmul.f32 %v908, 1.442695
    %v912 = vpow.pop %v911
    %v913 = vadd.f32 %v910, 1.0
    %v914 = vadd.f32 %v912, 1.0
    %v915 = vrcp.pop %v913
    %v916 = vmul.f32 1.0, %v915
    %v917 = vrcp.pop %v914
    %v918 = vmul.f32 1.0, %v917
    %v919 = vtanh.pop %v906
    %v920 = vmul.f32 %v916, %v735
    %922 = vrot.lane.b32.xlu0 %v919, 64
    %v923 = vpop.permute.xlu0 %922
    %v925 = vmul.f32 %v916, %v923
    %927 = vrot.lane.b32.xlu0 %v925, 64
    %v928 = vpop.permute.xlu0 %927
    %v930 = vadd.f32 %v920, %v928
    %v931 = vtanh.pop %v930
    %933 = vrot.lane.b32.xlu0 %v931, 64
    %v934 = vpop.permute.xlu0 %933
    %v936 = vmul.f32 %v918, %v934
    %v937 = vpack.c.bf16 %v936, %v936
    %v938 = vpack.c.bf16 %v863, %v863
    %v940 = vsel %vm199, %v938, 0
    %942 = vmatprep.subr.bf16.mxu0 %v302
    %943 = vmatpush1.bf16.msra.mxu0 %v301
    %944 = vmatprep.subr.bf16.mxu0 %v304
    %945 = vmatpush1.bf16.msra.mxu0 %v303
    %946 = vmatprep.subr.bf16.mxu0 %v306
    %947 = vmatpush1.bf16.msra.mxu0 %v305
    %948 = vmatprep.subr.bf16.mxu0 %v308
    %949 = vmatpush1.bf16.msra.mxu0 %v307
    %950 = vmatprep.subr.bf16.mxu0 0
    %951 = vmatpush1.bf16.msra.mxu0 0
    %952 = vmatprep.subr.bf16.mxu0 0
    %953 = vmatpush1.bf16.msra.mxu0 0
    %954 = vmatprep.subr.bf16.mxu0 0
    %955 = vmatpush1.bf16.msra.mxu0 0
    %956 = vmatprep.subr.bf16.mxu0 0
    %957 = vmatpush1.bf16.msra.mxu0 0
    %958 = vmatprep.subr.bf16.mxu0 0
    %959 = vmatpush1.bf16.msra.mxu0 0
    %960 = vmatprep.subr.bf16.mxu0 0
    %961 = vmatpush1.bf16.msra.mxu0 0
    %962 = vmatprep.subr.bf16.mxu0 0
    %963 = vmatpush1.bf16.msra.mxu0 0
    %964 = vmatprep.subr.bf16.mxu0 0
    %965 = vmatpush1.bf16.msra.mxu0 0
    %966 = vmatprep.subr.bf16.mxu0 0
    %967 = vmatpush1.bf16.msra.mxu0 0
    %968 = vmatprep.subr.bf16.mxu0 0
    %969 = vmatpush1.bf16.msra.mxu0 0
    %970 = vmatprep.subr.bf16.mxu0 0
    %971 = vmatpush1.bf16.msra.mxu0 0
    %972 = vmatprep.subr.bf16.mxu0 0
    %973 = vmatpush1.bf16.msra.mxu0 0
    %974 = vmatprep.mubr.bf16.mxu0 0
    %975 = vmatmul.mubr.bf16.gmra.mrb[0].mxu0 %v940
    %v976 = vpop.f32.mrb[0].mxu0
    %v977 = vadd.f32 0.0, %v976
    %v978 = vpop.f32.mrb[0].mxu0
    %v979 = vadd.f32 0.0, %v978
    %v980 = vpop.f32.mrb[0].mxu0
    %v981 = vpop.f32.mrb[0].mxu0
    %982 = vdwg.mxu0
    %v984 = vsel %vm199, %v937, 0
    %986 = vmatprep.subr.bf16.mxu0 %v383
    %987 = vmatpush1.bf16.msra.mxu0 %v382
    %988 = vmatprep.subr.bf16.mxu0 %v385
    %989 = vmatpush1.bf16.msra.mxu0 %v384
    %990 = vmatprep.subr.bf16.mxu0 %v387
    %991 = vmatpush1.bf16.msra.mxu0 %v386
    %992 = vmatprep.subr.bf16.mxu0 %v389
    %993 = vmatpush1.bf16.msra.mxu0 %v388
    %994 = vmatprep.subr.bf16.mxu0 0
    %995 = vmatpush1.bf16.msra.mxu0 0
    %996 = vmatprep.subr.bf16.mxu0 0
    %997 = vmatpush1.bf16.msra.mxu0 0
    %998 = vmatprep.subr.bf16.mxu0 0
    %999 = vmatpush1.bf16.msra.mxu0 0
    %1000 = vmatprep.subr.bf16.mxu0 0
    %1001 = vmatpush1.bf16.msra.mxu0 0
    %1002 = vmatprep.subr.bf16.mxu0 0
    %1003 = vmatpush1.bf16.msra.mxu0 0
    %1004 = vmatprep.subr.bf16.mxu0 0
    %1005 = vmatpush1.bf16.msra.mxu0 0
    %1006 = vmatprep.subr.bf16.mxu0 0
    %1007 = vmatpush1.bf16.msra.mxu0 0
    %1008 = vmatprep.subr.bf16.mxu0 0
    %1009 = vmatpush1.bf16.msra.mxu0 0
    %1010 = vmatprep.subr.bf16.mxu0 0
    %1011 = vmatpush1.bf16.msra.mxu0 0
    %1012 = vmatprep.subr.bf16.mxu0 0
    %1013 = vmatpush1.bf16.msra.mxu0 0
    %1014 = vmatprep.subr.bf16.mxu0 0
    %1015 = vmatpush1.bf16.msra.mxu0 0
    %1016 = vmatprep.subr.bf16.mxu0 0
    %1017 = vmatpush1.bf16.msra.mxu0 0
    %1018 = vmatprep.mubr.bf16.mxu0 0
    %1019 = vmatmul.mubr.bf16.gmra.mrb[0].mxu0 %v984
    %v1020 = vpop.f32.mrb[0].mxu0
    %v1021 = vadd.f32 %v977, %v1020
    %v1022 = vpop.f32.mrb[0].mxu0
    %v1023 = vadd.f32 %v979, %v1022
    %v1024 = vpop.f32.mrb[0].mxu0
    %v1025 = vpop.f32.mrb[0].mxu0
    %1026 = vdwg.mxu0
    %v1027 = vadd.f32 %v1021, %v34
    %v1028 = vadd.f32 %v1023, %v38
    %v1029 = vxor.u32 %v1027, 2147483648
    %v1030 = vxor.u32 %v1028, 2147483648
    %v1031 = vmul.f32 %v1029, 1.442695
    %v1032 = vpow.pop %v1031
    %v1033 = vmul.f32 %v1030, 1.442695
    %v1034 = vpow.pop %v1033
    %v1035 = vadd.f32 %v1032, 1.0
    %v1036 = vadd.f32 %v1034, 1.0
    %v1037 = vrcp.pop %v1035
    %v1038 = vmul.f32 1.0, %v1037
    %v1039 = vrcp.pop %v1036
    %v1040 = vmul.f32 1.0, %v1039
    %v1041 = vtanh.pop %v1028
    %v1042 = vmul.f32 %v1038, %v857
    %1044 = vrot.lane.b32.xlu0 %v1041, 64
    %v1045 = vpop.permute.xlu0 %1044
    %v1047 = vmul.f32 %v1038, %v1045
    %1049 = vrot.lane.b32.xlu0 %v1047, 64
    %v1050 = vpop.permute.xlu0 %1049
    %v1052 = vadd.f32 %v1042, %v1050
    %v1053 = vtanh.pop %v1052
    %1055 = vrot.lane.b32.xlu0 %v1053, 64
    %v1056 = vpop.permute.xlu0 %1055
    %v1058 = vmul.f32 %v1040, %v1056
    %1059 = vmatprep.subr.bf16.mxu0 %v184
    %1060 = vmatpush1.bf16.msra.mxu0 %v183
    %1061 = vmatprep.subr.bf16.mxu0 %v186
    %1062 = vmatpush1.bf16.msra.mxu0 %v185
    %1063 = vmatprep.subr.bf16.mxu0 %v188
    %1064 = vmatpush1.bf16.msra.mxu0 %v187
    %1065 = vmatprep.subr.bf16.mxu0 %v190
    %1066 = vmatpush1.bf16.msra.mxu0 %v189
    %1067 = vmatprep.subr.bf16.mxu0 0
    %1068 = vmatpush1.bf16.msra.mxu0 0
    %1069 = vmatprep.subr.bf16.mxu0 0
    %1070 = vmatpush1.bf16.msra.mxu0 0
    %1071 = vmatprep.subr.bf16.mxu0 0
    %1072 = vmatpush1.bf16.msra.mxu0 0
    %1073 = vmatprep.subr.bf16.mxu0 0
    %1074 = vmatpush1.bf16.msra.mxu0 0
    %1075 = vmatprep.subr.bf16.mxu0 0
    %1076 = vmatpush1.bf16.msra.mxu0 0
    %1077 = vmatprep.subr.bf16.mxu0 0
    %1078 = vmatpush1.bf16.msra.mxu0 0
    %1079 = vmatprep.subr.bf16.mxu0 0
    %1080 = vmatpush1.bf16.msra.mxu0 0
    %1081 = vmatprep.subr.bf16.mxu0 0
    %1082 = vmatpush1.bf16.msra.mxu0 0
    %1083 = vmatprep.subr.bf16.mxu0 0
    %1084 = vmatpush1.bf16.msra.mxu0 0
    %1085 = vmatprep.subr.bf16.mxu0 0
    %1086 = vmatpush1.bf16.msra.mxu0 0
    %1087 = vmatprep.subr.bf16.mxu0 0
    %1088 = vmatpush1.bf16.msra.mxu0 0
    %1089 = vmatprep.subr.bf16.mxu0 0
    %1090 = vmatpush1.bf16.msra.mxu0 0
    %1091 = vmatprep.mubr.bf16.mxu0 0
    %1092 = vmatmul.mubr.bf16.gmra.mrb[0].mxu0 %v984
    %v1093 = vpop.f32.mrb[0].mxu0
    %v1094 = vadd.f32 0.0, %v1093
    %v1095 = vpop.f32.mrb[0].mxu0
    %v1096 = vadd.f32 0.0, %v1095
    %v1097 = vpop.f32.mrb[0].mxu0
    %v1098 = vpop.f32.mrb[0].mxu0
    %1099 = vdwg.mxu0
    %v1100 = vadd.f32 %v151, %v1094
    %v1101 = vadd.f32 %v152, %v1096
    %v1102 = vxor.u32 %v1100, 2147483648
    %v1103 = vxor.u32 %v1101, 2147483648
    %v1104 = vmul.f32 %v1102, 1.442695
    %v1105 = vpow.pop %v1104
    %v1106 = vmul.f32 %v1103, 1.442695
    %v1107 = vpow.pop %v1106
    %v1108 = vadd.f32 %v1105, 1.0
    %v1109 = vadd.f32 %v1107, 1.0
    %v1110 = vrcp.pop %v1108
    %v1111 = vmul.f32 1.0, %v1110
    %v1112 = vrcp.pop %v1109
    %v1113 = vmul.f32 1.0, %v1112
    %v1114 = vtanh.pop %v1101
    %v1115 = vmul.f32 %v1111, %v930
    %1117 = vrot.lane.b32.xlu0 %v1114, 64
    %v1118 = vpop.permute.xlu0 %1117
    %v1120 = vmul.f32 %v1111, %v1118
    %1122 = vrot.lane.b32.xlu0 %v1120, 64
    %v1123 = vpop.permute.xlu0 %1122
    %v1125 = vadd.f32 %v1115, %v1123
    %v1126 = vtanh.pop %v1125
    %1128 = vrot.lane.b32.xlu0 %v1126, 64
    %v1129 = vpop.permute.xlu0 %1128
    %v1131 = vmul.f32 %v1113, %v1129
    %v1132 = vpack.c.bf16 %v1131, %v1131
    %v1133 = vpack.c.bf16 %v1058, %v1058
    %v1135 = vsel %vm199, %v1133, 0
    %1137 = vmatprep.subr.bf16.mxu0 %v302
    %1138 = vmatpush1.bf16.msra.mxu0 %v301
    %1139 = vmatprep.subr.bf16.mxu0 %v304
    %1140 = vmatpush1.bf16.msra.mxu0 %v303
    %1141 = vmatprep.subr.bf16.mxu0 %v306
    %1142 = vmatpush1.bf16.msra.mxu0 %v305
    %1143 = vmatprep.subr.bf16.mxu0 %v308
    %1144 = vmatpush1.bf16.msra.mxu0 %v307
    %1145 = vmatprep.subr.bf16.mxu0 0
    %1146 = vmatpush1.bf16.msra.mxu0 0
    %1147 = vmatprep.subr.bf16.mxu0 0
    %1148 = vmatpush1.bf16.msra.mxu0 0
    %1149 = vmatprep.subr.bf16.mxu0 0
    %1150 = vmatpush1.bf16.msra.mxu0 0
    %1151 = vmatprep.subr.bf16.mxu0 0
    %1152 = vmatpush1.bf16.msra.mxu0 0
    %1153 = vmatprep.subr.bf16.mxu0 0
    %1154 = vmatpush1.bf16.msra.mxu0 0
    %1155 = vmatprep.subr.bf16.mxu0 0
    %1156 = vmatpush1.bf16.msra.mxu0 0
    %1157 = vmatprep.subr.bf16.mxu0 0
    %1158 = vmatpush1.bf16.msra.mxu0 0
    %1159 = vmatprep.subr.bf16.mxu0 0
    %1160 = vmatpush1.bf16.msra.mxu0 0
    %1161 = vmatprep.subr.bf16.mxu0 0
    %1162 = vmatpush1.bf16.msra.mxu0 0
    %1163 = vmatprep.subr.bf16.mxu0 0
    %1164 = vmatpush1.bf16.msra.mxu0 0
    %1165 = vmatprep.subr.bf16.mxu0 0
    %1166 = vmatpush1.bf16.msra.mxu0 0
    %1167 = vmatprep.subr.bf16.mxu0 0
    %1168 = vmatpush1.bf16.msra.mxu0 0
    %1169 = vmatprep.mubr.bf16.mxu0 0
    %1170 = vmatmul.mubr.bf16.gmra.mrb[0].mxu0 %v1135
    %v1171 = vpop.f32.mrb[0].mxu0
    %v1172 = vadd.f32 0.0, %v1171
    %v1173 = vpop.f32.mrb[0].mxu0
    %v1174 = vadd.f32 0.0, %v1173
    %v1175 = vpop.f32.mrb[0].mxu0
    %v1176 = vpop.f32.mrb[0].mxu0
    %1177 = vdwg.mxu0
    %v1179 = vsel %vm199, %v1132, 0
    %1181 = vmatprep.subr.bf16.mxu0 %v383
    %1182 = vmatpush1.bf16.msra.mxu0 %v382
    %1183 = vmatprep.subr.bf16.mxu0 %v385
    %1184 = vmatpush1.bf16.msra.mxu0 %v384
    %1185 = vmatprep.subr.bf16.mxu0 %v387
    %1186 = vmatpush1.bf16.msra.mxu0 %v386
    %1187 = vmatprep.subr.bf16.mxu0 %v389
    %1188 = vmatpush1.bf16.msra.mxu0 %v388
    %1189 = vmatprep.subr.bf16.mxu0 0
    %1190 = vmatpush1.bf16.msra.mxu0 0
    %1191 = vmatprep.subr.bf16.mxu0 0
    %1192 = vmatpush1.bf16.msra.mxu0 0
    %1193 = vmatprep.subr.bf16.mxu0 0
    %1194 = vmatpush1.bf16.msra.mxu0 0
    %1195 = vmatprep.subr.bf16.mxu0 0
    %1196 = vmatpush1.bf16.msra.mxu0 0
    %1197 = vmatprep.subr.bf16.mxu0 0
    %1198 = vmatpush1.bf16.msra.mxu0 0
    %1199 = vmatprep.subr.bf16.mxu0 0
    %1200 = vmatpush1.bf16.msra.mxu0 0
    %1201 = vmatprep.subr.bf16.mxu0 0
    %1202 = vmatpush1.bf16.msra.mxu0 0
    %1203 = vmatprep.subr.bf16.mxu0 0
    %1204 = vmatpush1.bf16.msra.mxu0 0
    %1205 = vmatprep.subr.bf16.mxu0 0
    %1206 = vmatpush1.bf16.msra.mxu0 0
    %1207 = vmatprep.subr.bf16.mxu0 0
    %1208 = vmatpush1.bf16.msra.mxu0 0
    %1209 = vmatprep.subr.bf16.mxu0 0
    %1210 = vmatpush1.bf16.msra.mxu0 0
    %1211 = vmatprep.subr.bf16.mxu0 0
    %1212 = vmatpush1.bf16.msra.mxu0 0
    %1213 = vmatprep.mubr.bf16.mxu0 0
    %1214 = vmatmul.mubr.bf16.gmra.mrb[0].mxu0 %v1179
    %v1215 = vpop.f32.mrb[0].mxu0
    %v1216 = vadd.f32 %v1172, %v1215
    %v1217 = vpop.f32.mrb[0].mxu0
    %v1218 = vadd.f32 %v1174, %v1217
    %v1219 = vpop.f32.mrb[0].mxu0
    %v1220 = vpop.f32.mrb[0].mxu0
    %1221 = vdwg.mxu0
    %v1222 = vadd.f32 %v1216, %v34
    %v1223 = vadd.f32 %v1218, %v38
    %v1224 = vxor.u32 %v1222, 2147483648
    %v1225 = vxor.u32 %v1223, 2147483648
    %v1226 = vmul.f32 %v1224, 1.442695
    %v1227 = vpow.pop %v1226
    %v1228 = vmul.f32 %v1225, 1.442695
    %v1229 = vpow.pop %v1228
    %v1230 = vadd.f32 %v1227, 1.0
    %v1231 = vadd.f32 %v1229, 1.0
    %v1232 = vrcp.pop %v1230
    %v1233 = vmul.f32 1.0, %v1232
    %v1234 = vrcp.pop %v1231
    %v1235 = vmul.f32 1.0, %v1234
    %v1236 = vtanh.pop %v1223
    %v1237 = vmul.f32 %v1233, %v1052
    %1239 = vrot.lane.b32.xlu0 %v1236, 64
    %v1240 = vpop.permute.xlu0 %1239
    %v1242 = vmul.f32 %v1233, %v1240
    %1244 = vrot.lane.b32.xlu0 %v1242, 64
    %v1245 = vpop.permute.xlu0 %1244
    %v1247 = vadd.f32 %v1237, %v1245
    %v1248 = vtanh.pop %v1247
    %1250 = vrot.lane.b32.xlu0 %v1248, 64
    %v1251 = vpop.permute.xlu0 %1250
    %v1253 = vmul.f32 %v1235, %v1251
    %1254 = vmatprep.subr.bf16.mxu0 %v184
    %1255 = vmatpush1.bf16.msra.mxu0 %v183
    %1256 = vmatprep.subr.bf16.mxu0 %v186
    %1257 = vmatpush1.bf16.msra.mxu0 %v185
    %1258 = vmatprep.subr.bf16.mxu0 %v188
    %1259 = vmatpush1.bf16.msra.mxu0 %v187
    %1260 = vmatprep.subr.bf16.mxu0 %v190
    %1261 = vmatpush1.bf16.msra.mxu0 %v189
    %1262 = vmatprep.subr.bf16.mxu0 0
    %1263 = vmatpush1.bf16.msra.mxu0 0
    %1264 = vmatprep.subr.bf16.mxu0 0
    %1265 = vmatpush1.bf16.msra.mxu0 0
    %1266 = vmatprep.subr.bf16.mxu0 0
    %1267 = vmatpush1.bf16.msra.mxu0 0
    %1268 = vmatprep.subr.bf16.mxu0 0
    %1269 = vmatpush1.bf16.msra.mxu0 0
    %1270 = vmatprep.subr.bf16.mxu0 0
    %1271 = vmatpush1.bf16.msra.mxu0 0
    %1272 = vmatprep.subr.bf16.mxu0 0
    %1273 = vmatpush1.bf16.msra.mxu0 0
    %1274 = vmatprep.subr.bf16.mxu0 0
    %1275 = vmatpush1.bf16.msra.mxu0 0
    %1276 = vmatprep.subr.bf16.mxu0 0
    %1277 = vmatpush1.bf16.msra.mxu0 0
    %1278 = vmatprep.subr.bf16.mxu0 0
    %1279 = vmatpush1.bf16.msra.mxu0 0
    %1280 = vmatprep.subr.bf16.mxu0 0
    %1281 = vmatpush1.bf16.msra.mxu0 0
    %1282 = vmatprep.subr.bf16.mxu0 0
    %1283 = vmatpush1.bf16.msra.mxu0 0
    %1284 = vmatprep.subr.bf16.mxu0 0
    %1285 = vmatpush1.bf16.msra.mxu0 0
    %1286 = vmatprep.mubr.bf16.mxu0 0
    %1287 = vmatmul.mubr.bf16.gmra.mrb[0].mxu0 %v1179
    %v1288 = vpop.f32.mrb[0].mxu0
    %v1289 = vadd.f32 0.0, %v1288
    %v1290 = vpop.f32.mrb[0].mxu0
    %v1291 = vadd.f32 0.0, %v1290
    %v1292 = vpop.f32.mrb[0].mxu0
    %v1293 = vpop.f32.mrb[0].mxu0
    %1294 = vdwg.mxu0
    %v1295 = vadd.f32 %v153, %v1289
    %v1296 = vadd.f32 %v154, %v1291
    %v1297 = vxor.u32 %v1295, 2147483648
    %v1298 = vxor.u32 %v1296, 2147483648
    %v1299 = vmul.f32 %v1297, 1.442695
    %v1300 = vpow.pop %v1299
    %v1301 = vmul.f32 %v1298, 1.442695
    %v1302 = vpow.pop %v1301
    %v1303 = vadd.f32 %v1300, 1.0
    %v1304 = vadd.f32 %v1302, 1.0
    %v1305 = vrcp.pop %v1303
    %v1306 = vmul.f32 1.0, %v1305
    %v1307 = vrcp.pop %v1304
    %v1308 = vmul.f32 1.0, %v1307
    %v1309 = vtanh.pop %v1296
    %v1310 = vmul.f32 %v1306, %v1125
    %1312 = vrot.lane.b32.xlu0 %v1309, 64
    %v1313 = vpop.permute.xlu0 %1312
    %v1315 = vmul.f32 %v1306, %v1313
    %1317 = vrot.lane.b32.xlu0 %v1315, 64
    %v1318 = vpop.permute.xlu0 %1317
    %v1320 = vadd.f32 %v1310, %v1318
    %v1321 = vtanh.pop %v1320
    %1323 = vrot.lane.b32.xlu0 %v1321, 64
    %v1324 = vpop.permute.xlu0 %1323
    %v1326 = vmul.f32 %v1308, %v1324
    %v1327 = vpack.c.bf16 %v1326, %v1326
    %v1328 = vpack.c.bf16 %v1253, %v1253
    %v1330 = vsel %vm199, %v1328, 0
    %1332 = vmatprep.subr.bf16.mxu0 %v302
    %1333 = vmatpush1.bf16.msra.mxu0 %v301
    %1334 = vmatprep.subr.bf16.mxu0 %v304
    %1335 = vmatpush1.bf16.msra.mxu0 %v303
    %1336 = vmatprep.subr.bf16.mxu0 %v306
    %1337 = vmatpush1.bf16.msra.mxu0 %v305
    %1338 = vmatprep.subr.bf16.mxu0 %v308
    %1339 = vmatpush1.bf16.msra.mxu0 %v307
    %1340 = vmatprep.subr.bf16.mxu0 0
    %1341 = vmatpush1.bf16.msra.mxu0 0
    %1342 = vmatprep.subr.bf16.mxu0 0
    %1343 = vmatpush1.bf16.msra.mxu0 0
    %1344 = vmatprep.subr.bf16.mxu0 0
    %1345 = vmatpush1.bf16.msra.mxu0 0
    %1346 = vmatprep.subr.bf16.mxu0 0
    %1347 = vmatpush1.bf16.msra.mxu0 0
    %1348 = vmatprep.subr.bf16.mxu0 0
    %1349 = vmatpush1.bf16.msra.mxu0 0
    %1350 = vmatprep.subr.bf16.mxu0 0
    %1351 = vmatpush1.bf16.msra.mxu0 0
    %1352 = vmatprep.subr.bf16.mxu0 0
    %1353 = vmatpush1.bf16.msra.mxu0 0
    %1354 = vmatprep.subr.bf16.mxu0 0
    %1355 = vmatpush1.bf16.msra.mxu0 0
    %1356 = vmatprep.subr.bf16.mxu0 0
    %1357 = vmatpush1.bf16.msra.mxu0 0
    %1358 = vmatprep.subr.bf16.mxu0 0
    %1359 = vmatpush1.bf16.msra.mxu0 0
    %1360 = vmatprep.subr.bf16.mxu0 0
    %1361 = vmatpush1.bf16.msra.mxu0 0
    %1362 = vmatprep.subr.bf16.mxu0 0
    %1363 = vmatpush1.bf16.msra.mxu0 0
    %1364 = vmatprep.mubr.bf16.mxu0 0
    %1365 = vmatmul.mubr.bf16.gmra.mrb[0].mxu0 %v1330
    %v1366 = vpop.f32.mrb[0].mxu0
    %v1367 = vadd.f32 0.0, %v1366
    %v1368 = vpop.f32.mrb[0].mxu0
    %v1369 = vadd.f32 0.0, %v1368
    %v1370 = vpop.f32.mrb[0].mxu0
    %v1371 = vpop.f32.mrb[0].mxu0
    %1372 = vdwg.mxu0
    %v1374 = vsel %vm199, %v1327, 0
    %1376 = vmatprep.subr.bf16.mxu0 %v383
    %1377 = vmatpush1.bf16.msra.mxu0 %v382
    %1378 = vmatprep.subr.bf16.mxu0 %v385
    %1379 = vmatpush1.bf16.msra.mxu0 %v384
    %1380 = vmatprep.subr.bf16.mxu0 %v387
    %1381 = vmatpush1.bf16.msra.mxu0 %v386
    %1382 = vmatprep.subr.bf16.mxu0 %v389
    %1383 = vmatpush1.bf16.msra.mxu0 %v388
    %1384 = vmatprep.subr.bf16.mxu0 0
    %1385 = vmatpush1.bf16.msra.mxu0 0
    %1386 = vmatprep.subr.bf16.mxu0 0
    %1387 = vmatpush1.bf16.msra.mxu0 0
    %1388 = vmatprep.subr.bf16.mxu0 0
    %1389 = vmatpush1.bf16.msra.mxu0 0
    %1390 = vmatprep.subr.bf16.mxu0 0
    %1391 = vmatpush1.bf16.msra.mxu0 0
    %1392 = vmatprep.subr.bf16.mxu0 0
    %1393 = vmatpush1.bf16.msra.mxu0 0
    %1394 = vmatprep.subr.bf16.mxu0 0
    %1395 = vmatpush1.bf16.msra.mxu0 0
    %1396 = vmatprep.subr.bf16.mxu0 0
    %1397 = vmatpush1.bf16.msra.mxu0 0
    %1398 = vmatprep.subr.bf16.mxu0 0
    %1399 = vmatpush1.bf16.msra.mxu0 0
    %1400 = vmatprep.subr.bf16.mxu0 0
    %1401 = vmatpush1.bf16.msra.mxu0 0
    %1402 = vmatprep.subr.bf16.mxu0 0
    %1403 = vmatpush1.bf16.msra.mxu0 0
    %1404 = vmatprep.subr.bf16.mxu0 0
    %1405 = vmatpush1.bf16.msra.mxu0 0
    %1406 = vmatprep.subr.bf16.mxu0 0
    %1407 = vmatpush1.bf16.msra.mxu0 0
    %1408 = vmatprep.mubr.bf16.mxu0 0
    %1409 = vmatmul.mubr.bf16.gmra.mrb[0].mxu0 %v1374
    %v1410 = vpop.f32.mrb[0].mxu0
    %v1411 = vadd.f32 %v1367, %v1410
    %v1412 = vpop.f32.mrb[0].mxu0
    %v1413 = vadd.f32 %v1369, %v1412
    %v1414 = vpop.f32.mrb[0].mxu0
    %v1415 = vpop.f32.mrb[0].mxu0
    %1416 = vdwg.mxu0
    %v1417 = vadd.f32 %v1411, %v34
    %v1418 = vadd.f32 %v1413, %v38
    %v1419 = vxor.u32 %v1417, 2147483648
    %v1420 = vxor.u32 %v1418, 2147483648
    %v1421 = vmul.f32 %v1419, 1.442695
    %v1422 = vpow.pop %v1421
    %v1423 = vmul.f32 %v1420, 1.442695
    %v1424 = vpow.pop %v1423
    %v1425 = vadd.f32 %v1422, 1.0
    %v1426 = vadd.f32 %v1424, 1.0
    %v1427 = vrcp.pop %v1425
    %v1428 = vmul.f32 1.0, %v1427
    %v1429 = vrcp.pop %v1426
    %v1430 = vmul.f32 1.0, %v1429
    %v1431 = vtanh.pop %v1418
    %v1432 = vmul.f32 %v1428, %v1247
    %1434 = vrot.lane.b32.xlu0 %v1431, 64
    %v1435 = vpop.permute.xlu0 %1434
    %v1437 = vmul.f32 %v1428, %v1435
    %1439 = vrot.lane.b32.xlu0 %v1437, 64
    %v1440 = vpop.permute.xlu0 %1439
    %v1442 = vadd.f32 %v1432, %v1440
    %v1443 = vtanh.pop %v1442
    %1445 = vrot.lane.b32.xlu0 %v1443, 64
    %v1446 = vpop.permute.xlu0 %1445
    %v1448 = vmul.f32 %v1430, %v1446
    %1449 = vmatprep.subr.bf16.mxu0 %v184
    %1450 = vmatpush1.bf16.msra.mxu0 %v183
    %1451 = vmatprep.subr.bf16.mxu0 %v186
    %1452 = vmatpush1.bf16.msra.mxu0 %v185
    %1453 = vmatprep.subr.bf16.mxu0 %v188
    %1454 = vmatpush1.bf16.msra.mxu0 %v187
    %1455 = vmatprep.subr.bf16.mxu0 %v190
    %1456 = vmatpush1.bf16.msra.mxu0 %v189
    %1457 = vmatprep.subr.bf16.mxu0 0
    %1458 = vmatpush1.bf16.msra.mxu0 0
    %1459 = vmatprep.subr.bf16.mxu0 0
    %1460 = vmatpush1.bf16.msra.mxu0 0
    %1461 = vmatprep.subr.bf16.mxu0 0
    %1462 = vmatpush1.bf16.msra.mxu0 0
    %1463 = vmatprep.subr.bf16.mxu0 0
    %1464 = vmatpush1.bf16.msra.mxu0 0
    %1465 = vmatprep.subr.bf16.mxu0 0
    %1466 = vmatpush1.bf16.msra.mxu0 0
    %1467 = vmatprep.subr.bf16.mxu0 0
    %1468 = vmatpush1.bf16.msra.mxu0 0
    %1469 = vmatprep.subr.bf16.mxu0 0
    %1470 = vmatpush1.bf16.msra.mxu0 0
    %1471 = vmatprep.subr.bf16.mxu0 0
    %1472 = vmatpush1.bf16.msra.mxu0 0
    %1473 = vmatprep.subr.bf16.mxu0 0
    %1474 = vmatpush1.bf16.msra.mxu0 0
    %1475 = vmatprep.subr.bf16.mxu0 0
    %1476 = vmatpush1.bf16.msra.mxu0 0
    %1477 = vmatprep.subr.bf16.mxu0 0
    %1478 = vmatpush1.bf16.msra.mxu0 0
    %1479 = vmatprep.subr.bf16.mxu0 0
    %1480 = vmatpush1.bf16.msra.mxu0 0
    %1481 = vmatprep.mubr.bf16.mxu0 0
    %1482 = vmatmul.mubr.bf16.gmra.mrb[0].mxu0 %v1374
    %v1483 = vpop.f32.mrb[0].mxu0
    %v1484 = vadd.f32 0.0, %v1483
    %v1485 = vpop.f32.mrb[0].mxu0
    %v1486 = vadd.f32 0.0, %v1485
    %v1487 = vpop.f32.mrb[0].mxu0
    %v1488 = vpop.f32.mrb[0].mxu0
    %1489 = vdwg.mxu0
    %v1490 = vadd.f32 %v155, %v1484
    %v1491 = vadd.f32 %v156, %v1486
    %v1492 = vxor.u32 %v1490, 2147483648
    %v1493 = vxor.u32 %v1491, 2147483648
    %v1494 = vmul.f32 %v1492, 1.442695
    %v1495 = vpow.pop %v1494
    %v1496 = vmul.f32 %v1493, 1.442695
    %v1497 = vpow.pop %v1496
    %v1498 = vadd.f32 %v1495, 1.0
    %v1499 = vadd.f32 %v1497, 1.0
    %v1500 = vrcp.pop %v1498
    %v1501 = vmul.f32 1.0, %v1500
    %v1502 = vrcp.pop %v1499
    %v1503 = vmul.f32 1.0, %v1502
    %v1504 = vtanh.pop %v1491
    %v1505 = vmul.f32 %v1501, %v1320
    %1507 = vrot.lane.b32.xlu0 %v1504, 64
    %v1508 = vpop.permute.xlu0 %1507
    %v1510 = vmul.f32 %v1501, %v1508
    %1512 = vrot.lane.b32.xlu0 %v1510, 64
    %v1513 = vpop.permute.xlu0 %1512
    %v1515 = vadd.f32 %v1505, %v1513
    %v1516 = vtanh.pop %v1515
    %1518 = vrot.lane.b32.xlu0 %v1516, 64
    %v1519 = vpop.permute.xlu0 %1518
    %v1521 = vmul.f32 %v1503, %v1519
    %v1522 = vpack.c.bf16 %v1521, %v1521
    %v1523 = vpack.c.bf16 %v1448, %v1448
    %v1525 = vsel %vm199, %v1523, 0
    %1527 = vmatprep.subr.bf16.mxu0 %v302
    %1528 = vmatpush1.bf16.msra.mxu0 %v301
    %1529 = vmatprep.subr.bf16.mxu0 %v304
    %1530 = vmatpush1.bf16.msra.mxu0 %v303
    %1531 = vmatprep.subr.bf16.mxu0 %v306
    %1532 = vmatpush1.bf16.msra.mxu0 %v305
    %1533 = vmatprep.subr.bf16.mxu0 %v308
    %1534 = vmatpush1.bf16.msra.mxu0 %v307
    %1535 = vmatprep.subr.bf16.mxu0 0
    %1536 = vmatpush1.bf16.msra.mxu0 0
    %1537 = vmatprep.subr.bf16.mxu0 0
    %1538 = vmatpush1.bf16.msra.mxu0 0
    %1539 = vmatprep.subr.bf16.mxu0 0
    %1540 = vmatpush1.bf16.msra.mxu0 0
    %1541 = vmatprep.subr.bf16.mxu0 0
    %1542 = vmatpush1.bf16.msra.mxu0 0
    %1543 = vmatprep.subr.bf16.mxu0 0
    %1544 = vmatpush1.bf16.msra.mxu0 0
    %1545 = vmatprep.subr.bf16.mxu0 0
    %1546 = vmatpush1.bf16.msra.mxu0 0
    %1547 = vmatprep.subr.bf16.mxu0 0
    %1548 = vmatpush1.bf16.msra.mxu0 0
    %1549 = vmatprep.subr.bf16.mxu0 0
    %1550 = vmatpush1.bf16.msra.mxu0 0
    %1551 = vmatprep.subr.bf16.mxu0 0
    %1552 = vmatpush1.bf16.msra.mxu0 0
    %1553 = vmatprep.subr.bf16.mxu0 0
    %1554 = vmatpush1.bf16.msra.mxu0 0
    %1555 = vmatprep.subr.bf16.mxu0 0
    %1556 = vmatpush1.bf16.msra.mxu0 0
    %1557 = vmatprep.subr.bf16.mxu0 0
    %1558 = vmatpush1.bf16.msra.mxu0 0
    %1559 = vmatprep.mubr.bf16.mxu0 0
    %1560 = vmatmul.mubr.bf16.gmra.mrb[0].mxu0 %v1525
    %v1561 = vpop.f32.mrb[0].mxu0
    %v1562 = vadd.f32 0.0, %v1561
    %v1563 = vpop.f32.mrb[0].mxu0
    %v1564 = vadd.f32 0.0, %v1563
    %v1565 = vpop.f32.mrb[0].mxu0
    %v1566 = vpop.f32.mrb[0].mxu0
    %1567 = vdwg.mxu0
    %v1569 = vsel %vm199, %v1522, 0
    %1571 = vmatprep.subr.bf16.mxu0 %v383
    %1572 = vmatpush1.bf16.msra.mxu0 %v382
    %1573 = vmatprep.subr.bf16.mxu0 %v385
    %1574 = vmatpush1.bf16.msra.mxu0 %v384
    %1575 = vmatprep.subr.bf16.mxu0 %v387
    %1576 = vmatpush1.bf16.msra.mxu0 %v386
    %1577 = vmatprep.subr.bf16.mxu0 %v389
    %1578 = vmatpush1.bf16.msra.mxu0 %v388
    %1579 = vmatprep.subr.bf16.mxu0 0
    %1580 = vmatpush1.bf16.msra.mxu0 0
    %1581 = vmatprep.subr.bf16.mxu0 0
    %1582 = vmatpush1.bf16.msra.mxu0 0
    %1583 = vmatprep.subr.bf16.mxu0 0
    %1584 = vmatpush1.bf16.msra.mxu0 0
    %1585 = vmatprep.subr.bf16.mxu0 0
    %1586 = vmatpush1.bf16.msra.mxu0 0
    %1587 = vmatprep.subr.bf16.mxu0 0
    %1588 = vmatpush1.bf16.msra.mxu0 0
    %1589 = vmatprep.subr.bf16.mxu0 0
    %1590 = vmatpush1.bf16.msra.mxu0 0
    %1591 = vmatprep.subr.bf16.mxu0 0
    %1592 = vmatpush1.bf16.msra.mxu0 0
    %1593 = vmatprep.subr.bf16.mxu0 0
    %1594 = vmatpush1.bf16.msra.mxu0 0
    %1595 = vmatprep.subr.bf16.mxu0 0
    %1596 = vmatpush1.bf16.msra.mxu0 0
    %1597 = vmatprep.subr.bf16.mxu0 0
    %1598 = vmatpush1.bf16.msra.mxu0 0
    %1599 = vmatprep.subr.bf16.mxu0 0
    %1600 = vmatpush1.bf16.msra.mxu0 0
    %1601 = vmatprep.subr.bf16.mxu0 0
    %1602 = vmatpush1.bf16.msra.mxu0 0
    %1603 = vmatprep.mubr.bf16.mxu0 0
    %1604 = vmatmul.mubr.bf16.gmra.mrb[0].mxu0 %v1569
    %v1605 = vpop.f32.mrb[0].mxu0
    %v1606 = vadd.f32 %v1562, %v1605
    %v1607 = vpop.f32.mrb[0].mxu0
    %v1608 = vadd.f32 %v1564, %v1607
    %v1609 = vpop.f32.mrb[0].mxu0
    %v1610 = vpop.f32.mrb[0].mxu0
    %1611 = vdwg.mxu0
    %v1612 = vadd.f32 %v1606, %v34
    %v1613 = vadd.f32 %v1608, %v38
    %v1614 = vxor.u32 %v1612, 2147483648
    %v1615 = vxor.u32 %v1613, 2147483648
    %v1616 = vmul.f32 %v1614, 1.442695
    %v1617 = vpow.pop %v1616
    %v1618 = vmul.f32 %v1615, 1.442695
    %v1619 = vpow.pop %v1618
    %v1620 = vadd.f32 %v1617, 1.0
    %v1621 = vadd.f32 %v1619, 1.0
    %v1622 = vrcp.pop %v1620
    %v1623 = vmul.f32 1.0, %v1622
    %v1624 = vrcp.pop %v1621
    %v1625 = vmul.f32 1.0, %v1624
    %v1626 = vtanh.pop %v1613
    %v1627 = vmul.f32 %v1623, %v1442
    %1629 = vrot.lane.b32.xlu0 %v1626, 64
    %v1630 = vpop.permute.xlu0 %1629
    %v1632 = vmul.f32 %v1623, %v1630
    %1634 = vrot.lane.b32.xlu0 %v1632, 64
    %v1635 = vpop.permute.xlu0 %1634
    %v1637 = vadd.f32 %v1627, %v1635
    %v1638 = vtanh.pop %v1637
    %1640 = vrot.lane.b32.xlu0 %v1638, 64
    %v1641 = vpop.permute.xlu0 %1640
    %v1643 = vmul.f32 %v1625, %v1641
    %1644 = vmatprep.subr.bf16.mxu0 %v184
    %1645 = vmatpush1.bf16.msra.mxu0 %v183
    %1646 = vmatprep.subr.bf16.mxu0 %v186
    %1647 = vmatpush1.bf16.msra.mxu0 %v185
    %1648 = vmatprep.subr.bf16.mxu0 %v188
    %1649 = vmatpush1.bf16.msra.mxu0 %v187
    %1650 = vmatprep.subr.bf16.mxu0 %v190
    %1651 = vmatpush1.bf16.msra.mxu0 %v189
    %1652 = vmatprep.subr.bf16.mxu0 0
    %1653 = vmatpush1.bf16.msra.mxu0 0
    %1654 = vmatprep.subr.bf16.mxu0 0
    %1655 = vmatpush1.bf16.msra.mxu0 0
    %1656 = vmatprep.subr.bf16.mxu0 0
    %1657 = vmatpush1.bf16.msra.mxu0 0
    %1658 = vmatprep.subr.bf16.mxu0 0
    %1659 = vmatpush1.bf16.msra.mxu0 0
    %1660 = vmatprep.subr.bf16.mxu0 0
    %1661 = vmatpush1.bf16.msra.mxu0 0
    %1662 = vmatprep.subr.bf16.mxu0 0
    %1663 = vmatpush1.bf16.msra.mxu0 0
    %1664 = vmatprep.subr.bf16.mxu0 0
    %1665 = vmatpush1.bf16.msra.mxu0 0
    %1666 = vmatprep.subr.bf16.mxu0 0
    %1667 = vmatpush1.bf16.msra.mxu0 0
    %1668 = vmatprep.subr.bf16.mxu0 0
    %1669 = vmatpush1.bf16.msra.mxu0 0
    %1670 = vmatprep.subr.bf16.mxu0 0
    %1671 = vmatpush1.bf16.msra.mxu0 0
    %1672 = vmatprep.subr.bf16.mxu0 0
    %1673 = vmatpush1.bf16.msra.mxu0 0
    %1674 = vmatprep.subr.bf16.mxu0 0
    %1675 = vmatpush1.bf16.msra.mxu0 0
    %1676 = vmatprep.mubr.bf16.mxu0 0
    %1677 = vmatmul.mubr.bf16.gmra.mrb[0].mxu0 %v1569
    %v1678 = vpop.f32.mrb[0].mxu0
    %v1679 = vadd.f32 0.0, %v1678
    %v1680 = vpop.f32.mrb[0].mxu0
    %v1681 = vadd.f32 0.0, %v1680
    %v1682 = vpop.f32.mrb[0].mxu0
    %v1683 = vpop.f32.mrb[0].mxu0
    %1684 = vdwg.mxu0
    %v1685 = vadd.f32 %v157, %v1679
    %v1686 = vadd.f32 %v158, %v1681
    %v1687 = vxor.u32 %v1685, 2147483648
    %v1688 = vxor.u32 %v1686, 2147483648
    %v1689 = vmul.f32 %v1687, 1.442695
    %v1690 = vpow.pop %v1689
    %v1691 = vmul.f32 %v1688, 1.442695
    %v1692 = vpow.pop %v1691
    %v1693 = vadd.f32 %v1690, 1.0
    %v1694 = vadd.f32 %v1692, 1.0
    %v1695 = vrcp.pop %v1693
    %v1696 = vmul.f32 1.0, %v1695
    %v1697 = vrcp.pop %v1694
    %v1698 = vmul.f32 1.0, %v1697
    %v1699 = vtanh.pop %v1686
    %v1700 = vmul.f32 %v1696, %v1515
    %1702 = vrot.lane.b32.xlu0 %v1699, 64
    %v1703 = vpop.permute.xlu0 %1702
    %v1705 = vmul.f32 %v1696, %v1703
    %1707 = vrot.lane.b32.xlu0 %v1705, 64
    %v1708 = vpop.permute.xlu0 %1707
    %v1710 = vadd.f32 %v1700, %v1708
    %v1711 = vtanh.pop %v1710
    %1713 = vrot.lane.b32.xlu0 %v1711, 64
    %v1714 = vpop.permute.xlu0 %1713
    %v1716 = vmul.f32 %v1698, %v1714
    %v1717 = vpack.c.bf16 %v1716, %v1716
    %v1718 = vpack.c.bf16 %v1643, %v1643
    %v1720 = vsel %vm199, %v1718, 0
    %1722 = vmatprep.subr.bf16.mxu0 %v302
    %1723 = vmatpush1.bf16.msra.mxu0 %v301
    %1724 = vmatprep.subr.bf16.mxu0 %v304
    %1725 = vmatpush1.bf16.msra.mxu0 %v303
    %1726 = vmatprep.subr.bf16.mxu0 %v306
    %1727 = vmatpush1.bf16.msra.mxu0 %v305
    %1728 = vmatprep.subr.bf16.mxu0 %v308
    %1729 = vmatpush1.bf16.msra.mxu0 %v307
    %1730 = vmatprep.subr.bf16.mxu0 0
    %1731 = vmatpush1.bf16.msra.mxu0 0
    %1732 = vmatprep.subr.bf16.mxu0 0
    %1733 = vmatpush1.bf16.msra.mxu0 0
    %1734 = vmatprep.subr.bf16.mxu0 0
    %1735 = vmatpush1.bf16.msra.mxu0 0
    %1736 = vmatprep.subr.bf16.mxu0 0
    %1737 = vmatpush1.bf16.msra.mxu0 0
    %1738 = vmatprep.subr.bf16.mxu0 0
    %1739 = vmatpush1.bf16.msra.mxu0 0
    %1740 = vmatprep.subr.bf16.mxu0 0
    %1741 = vmatpush1.bf16.msra.mxu0 0
    %1742 = vmatprep.subr.bf16.mxu0 0
    %1743 = vmatpush1.bf16.msra.mxu0 0
    %1744 = vmatprep.subr.bf16.mxu0 0
    %1745 = vmatpush1.bf16.msra.mxu0 0
    %1746 = vmatprep.subr.bf16.mxu0 0
    %1747 = vmatpush1.bf16.msra.mxu0 0
    %1748 = vmatprep.subr.bf16.mxu0 0
    %1749 = vmatpush1.bf16.msra.mxu0 0
    %1750 = vmatprep.subr.bf16.mxu0 0
    %1751 = vmatpush1.bf16.msra.mxu0 0
    %1752 = vmatprep.subr.bf16.mxu0 0
    %1753 = vmatpush1.bf16.msra.mxu0 0
    %1754 = vmatprep.mubr.bf16.mxu0 0
    %1755 = vmatmul.mubr.bf16.gmra.mrb[0].mxu0 %v1720
    %v1756 = vpop.f32.mrb[0].mxu0
    %v1757 = vadd.f32 0.0, %v1756
    %v1758 = vpop.f32.mrb[0].mxu0
    %v1759 = vadd.f32 0.0, %v1758
    %v1760 = vpop.f32.mrb[0].mxu0
    %v1761 = vpop.f32.mrb[0].mxu0
    %1762 = vdwg.mxu0
    %v1764 = vsel %vm199, %v1717, 0
    %1766 = vmatprep.subr.bf16.mxu0 %v383
    %1767 = vmatpush1.bf16.msra.mxu0 %v382
    %1768 = vmatprep.subr.bf16.mxu0 %v385
    %1769 = vmatpush1.bf16.msra.mxu0 %v384
    %1770 = vmatprep.subr.bf16.mxu0 %v387
    %1771 = vmatpush1.bf16.msra.mxu0 %v386
    %1772 = vmatprep.subr.bf16.mxu0 %v389
    %1773 = vmatpush1.bf16.msra.mxu0 %v388
    %1774 = vmatprep.subr.bf16.mxu0 0
    %1775 = vmatpush1.bf16.msra.mxu0 0
    %1776 = vmatprep.subr.bf16.mxu0 0
    %1777 = vmatpush1.bf16.msra.mxu0 0
    %1778 = vmatprep.subr.bf16.mxu0 0
    %1779 = vmatpush1.bf16.msra.mxu0 0
    %1780 = vmatprep.subr.bf16.mxu0 0
    %1781 = vmatpush1.bf16.msra.mxu0 0
    %1782 = vmatprep.subr.bf16.mxu0 0
    %1783 = vmatpush1.bf16.msra.mxu0 0
    %1784 = vmatprep.subr.bf16.mxu0 0
    %1785 = vmatpush1.bf16.msra.mxu0 0
    %1786 = vmatprep.subr.bf16.mxu0 0
    %1787 = vmatpush1.bf16.msra.mxu0 0
    %1788 = vmatprep.subr.bf16.mxu0 0
    %1789 = vmatpush1.bf16.msra.mxu0 0
    %1790 = vmatprep.subr.bf16.mxu0 0
    %1791 = vmatpush1.bf16.msra.mxu0 0
    %1792 = vmatprep.subr.bf16.mxu0 0
    %1793 = vmatpush1.bf16.msra.mxu0 0
    %1794 = vmatprep.subr.bf16.mxu0 0
    %1795 = vmatpush1.bf16.msra.mxu0 0
    %1796 = vmatprep.subr.bf16.mxu0 0
    %1797 = vmatpush1.bf16.msra.mxu0 0
    %1798 = vmatprep.mubr.bf16.mxu0 0
    %1799 = vmatmul.mubr.bf16.gmra.mrb[0].mxu0 %v1764
    %v1800 = vpop.f32.mrb[0].mxu0
    %v1801 = vadd.f32 %v1757, %v1800
    %v1802 = vpop.f32.mrb[0].mxu0
    %v1803 = vadd.f32 %v1759, %v1802
    %v1804 = vpop.f32.mrb[0].mxu0
    %v1805 = vpop.f32.mrb[0].mxu0
    %1806 = vdwg.mxu0
    %v1807 = vadd.f32 %v1801, %v34
    %v1808 = vadd.f32 %v1803, %v38
    %v1809 = vxor.u32 %v1807, 2147483648
    %v1810 = vxor.u32 %v1808, 2147483648
    %v1811 = vmul.f32 %v1809, 1.442695
    %v1812 = vpow.pop %v1811
    %v1813 = vmul.f32 %v1810, 1.442695
    %v1814 = vpow.pop %v1813
    %v1815 = vadd.f32 %v1812, 1.0
    %v1816 = vadd.f32 %v1814, 1.0
    %v1817 = vrcp.pop %v1815
    %v1818 = vmul.f32 1.0, %v1817
    %v1819 = vrcp.pop %v1816
    %v1820 = vmul.f32 1.0, %v1819
    %v1821 = vtanh.pop %v1808
    %v1822 = vmul.f32 %v1818, %v1637
    %1824 = vrot.lane.b32.xlu0 %v1821, 64
    %v1825 = vpop.permute.xlu0 %1824
    %v1827 = vmul.f32 %v1818, %v1825
    %1829 = vrot.lane.b32.xlu0 %v1827, 64
    %v1830 = vpop.permute.xlu0 %1829
    %v1832 = vadd.f32 %v1822, %v1830
    %v1833 = vtanh.pop %v1832
    %1835 = vrot.lane.b32.xlu0 %v1833, 64
    %v1836 = vpop.permute.xlu0 %1835
    %v1838 = vmul.f32 %v1820, %v1836
    %v1839 = vlaneseq
    %v1840 = vshrl.u32 %v1839, 7
    %v1841 = vsub.s32 3, %v1840
    %v1842 = vrot.slane %v29, %v1841
    %v1843 = vmul.f32 %v1838, %v1842
    %v1844 = vsel %vm199, %v1843, 0.0
    %1845 = vadd.xlane.f32.xlu0 %v1844
    %v1846 = vpop.xlane.xlu0 %1845
    %v1847 = vlaneseq
    %v1848 = vshrl.u32 %v1847, 7
    %v1849 = vsub.s32 4, %v1848
    %v1850 = vrot.slane %v29, %v1849
    %v1851 = vadd.f32 %v1846, %v1850
    %vm1852 = vcmask 7168
    %1853 = vst.msk [vmem:[%s3] sm:$0xff] %vm1852, %v1851
    // Predicated region
    $region18: #{weather_lstm_forward.1} parent=1 // pred_check
      _
    $region19: #{weather_lstm_forward.1} parent=1 // pred_check_branch
      %1855 = sbr.rel (0) target = $region21
    $region20: #{weather_lstm_forward.1} parent=1 // pred_region
      _
    $region21: #{weather_lstm_forward.1} parent=1 // pred_fallthru
      _
    // Predicated region
    $region22: #{weather_lstm_forward.1} parent=1 // pred_check
      _
    $region23: #{weather_lstm_forward.1} parent=1 // pred_check_branch
      %1857 = sbr.rel (0) target = $region25
    $region24: #{weather_lstm_forward.1} parent=1 // pred_region
      _
    $region25: #{weather_lstm_forward.1} parent=1 // pred_fallthru
      _
    %1858 = vsyncpa [#allocation3], 1

</llo_original>
